<compile_context>
chip_gen: v7x
topology: tpu7x:2x2x1
jax: 0.10.0
libtpu: 0.0.40
codegen_flags: <defaults>
</compile_context>

<pallas_src>
import math

import jax
import jax.numpy as jnp
from jax.experimental import pallas as pl
from jax.experimental.pallas import tpu as pltpu

LOG_SQRT_2PI = math.log(math.sqrt(2.0 * math.pi))


def _round_up(a, b):
    return (a + b - 1) // b * b


def _nf_forward_kernel(x_ref, w1_ref, b1_ref, w2_ref, b2_ref, w3_ref, b3_ref,
                       z_ref, stats_ref):
    x = x_ref[...].astype(jnp.float32)
    m, d = x.shape
    d2 = d // 2
    n_flows = w1_ref.shape[0] // 2   # two fused (t|s) nets per flow

    def fused_ts(h, idx):
        # Fused t/s coupling net: one (d2 -> 2H -> 2H -> 2*d2) MLP whose W2/W3
        # are block-diagonal, so output cols [:d2] are t and [d2:] are s.
        h = jnp.tanh(jnp.dot(h, w1_ref[idx], preferred_element_type=jnp.float32)
                     + b1_ref[idx])
        h = jnp.tanh(jnp.dot(h, w2_ref[idx], preferred_element_type=jnp.float32)
                     + b2_ref[idx])
        o = (jnp.dot(h, w3_ref[idx], preferred_element_type=jnp.float32)
             + b3_ref[idx])
        return o[:, :d2], o[:, d2:]

    # Split once per batch tile (NOT once per flow) and carry the halves.
    lower = x[:, :d2]
    upper = x[:, d2:]
    log_det = jnp.zeros((m, 1), jnp.float32)

    # Small static flow count -> unrolled Python loop.
    for k in range(n_flows):
        t1, s1 = fused_ts(lower, 2 * k + 0)
        upper = t1 + upper * jnp.exp(s1)
        t2, s2 = fused_ts(upper, 2 * k + 1)
        lower = t2 + lower * jnp.exp(s2)
        log_det = (log_det
                   + jnp.sum(s1, axis=1, keepdims=True)
                   + jnp.sum(s2, axis=1, keepdims=True))

    z = jnp.concatenate([lower, upper], axis=1)   # one concat per tile
    z_ref[...] = z.astype(z_ref.dtype)

    # Prior: MultivariateGaussian(mu=0, log_sigma=0) -> sigma = 1.
    prior = jnp.sum(-0.5 * z * z - LOG_SQRT_2PI, axis=1, keepdims=True)
    # Pack the two per-row scalars into a single denser (m, 2) store.
    stats_ref[...] = jnp.concatenate([prior, log_det], axis=1)


def nf_forward(x, fused_params, cond_inputs=None, tile_m=512):
    """Composite normalizing-flow forward. Returns (z, prior_logprob, log_det)."""
    del cond_inputs  # coupling flows here are unconditional
    w1, b1, w2, b2, w3, b3 = fused_params
    m, d = x.shape

    tm = min(tile_m, _round_up(m, 8))
    mp = _round_up(m, tm)
    if mp != m:
        x = jnp.pad(x, ((0, mp - m), (0, 0)))
    grid = (mp // tm,)

    row_spec = pl.BlockSpec((tm, d), lambda i: (i, 0))
    stat_spec = pl.BlockSpec((tm, 2), lambda i: (i, 0))

    def resident(p):
        # Full-array block + constant block index -> fetched once, VMEM-resident.
        return pl.BlockSpec(p.shape, lambda i, _nd=p.ndim: (0,) * _nd)

    n_fused, d2, h2 = w1.shape   # h2 = 2 * hidden
    flops_per_row = 2 * n_fused * (d2 * h2 + h2 * h2 + h2 * 2 * d2)
    transc_per_row = n_fused * (2 * h2 + d2)   # two tanh layers + exp(s)
    w_bytes = sum(int(p.size) * p.dtype.itemsize for p in fused_params)
    cost = pl.CostEstimate(
        flops=flops_per_row * mp,
        transcendentals=transc_per_row * mp,
        bytes_accessed=4 * (2 * mp * d + 2 * mp) + w_bytes,
    )

    z, stats = pl.pallas_call(
        _nf_forward_kernel,
        out_shape=(
            jax.ShapeDtypeStruct((mp, d), x.dtype),
            jax.ShapeDtypeStruct((mp, 2), jnp.float32),
        ),
        grid=grid,
        in_specs=[row_spec] + [resident(p) for p in fused_params],
        out_specs=(row_spec, stat_spec),
        compiler_params=pltpu.CompilerParams(
            dimension_semantics=("parallel",)),
        cost_estimate=cost,
    )(x, w1, b1, w2, b2, w3, b3)

    return z[:m], stats[:m, 0], stats[:m, 1]


def init_flow_params(key, n_flows, flow_dim, hidden):
    """Deterministic stacked weights for 4 nets (t1, s1, t2, s2) per flow."""
    d2 = flow_dim // 2
    n_nets = 4 * n_flows
    k1, k2, k3 = jax.random.split(key, 3)
    scale = 0.1
    w1 = scale * jax.random.normal(k1, (n_nets, d2, hidden), jnp.float32)
    b1 = jnp.zeros((n_nets, 1, hidden), jnp.float32)
    w2 = scale * jax.random.normal(k2, (n_nets, hidden, hidden), jnp.float32)
    b2 = jnp.zeros((n_nets, 1, hidden), jnp.float32)
    w3 = scale * jax.random.normal(k3, (n_nets, hidden, d2), jnp.float32)
    b3 = jnp.zeros((n_nets, 1, d2), jnp.float32)
    return (w1, b1, w2, b2, w3, b3)


def fuse_flow_params(params):
    """Fuse each (t, s) net pair into one block-diagonal MLP (3 matmuls/half-flow).

    Exact re-parameterization: the extra weight entries are zeros, so results are
    numerically equivalent to running the two nets separately.
    """
    w1, b1, w2, b2, w3, b3 = params
    n_nets, d2, h = w1.shape
    dt = w1.dtype
    zhh = jnp.zeros((h, h), dt)
    zhd = jnp.zeros((h, d2), dt)

    def pair(ti, si):
        fw1 = jnp.concatenate([w1[ti], w1[si]], axis=1)          # (d2, 2H)
        fb1 = jnp.concatenate([b1[ti], b1[si]], axis=1)          # (1, 2H)
        fw2 = jnp.block([[w2[ti], zhh], [zhh, w2[si]]])          # (2H, 2H)
        fb2 = jnp.concatenate([b2[ti], b2[si]], axis=1)          # (1, 2H)
        fw3 = jnp.block([[w3[ti], zhd], [zhd, w3[si]]])          # (2H, 2*d2)
        fb3 = jnp.concatenate([b3[ti], b3[si]], axis=1)          # (1, 2*d2)
        return fw1, fb1, fw2, fb2, fw3, fb3

    pairs = [pair(i, i + 1) for i in range(0, n_nets, 2)]        # (t1,s1),(t2,s2),...
    return tuple(jnp.stack([p[j] for p in pairs]) for j in range(6))


def nf_forward_ref(x, params):
    """Pure-JAX reference of the same forward pass (unfused params)."""
    w1, b1, w2, b2, w3, b3 = params
    d = x.shape[1]
    d2 = d // 2
    n_flows = w1.shape[0] // 4

    def mlp(h, i):
        h = jnp.tanh(h @ w1[i] + b1[i])
        h = jnp.tanh(h @ w2[i] + b2[i])
        return h @ w3[i] + b3[i]

    log_det = jnp.zeros((x.shape[0],), jnp.float32)
    for k in range(n_flows):
        lower, upper = x[:, :d2], x[:, d2:]
        t1, s1 = mlp(lower, 4 * k), mlp(lower, 4 * k + 1)
        upper = t1 + upper * jnp.exp(s1)
        t2, s2 = mlp(upper, 4 * k + 2), mlp(upper, 4 * k + 3)
        lower = t2 + lower * jnp.exp(s2)
        x = jnp.concatenate([lower, upper], axis=1)
        log_det = log_det + jnp.sum(s1, axis=1) + jnp.sum(s2, axis=1)
    prior = jnp.sum(-0.5 * x * x - LOG_SQRT_2PI, axis=1)
    return x, prior, log_det


if __name__ == "__main__":
    M, FLOW_DIM, HIDDEN, N_FLOWS = 8, 16, 32, 2

    key = jax.random.PRNGKey(0)
    kx, kp = jax.random.split(key)
    x = jax.random.normal(kx, (M, FLOW_DIM), jnp.float32)
    params = init_flow_params(kp, N_FLOWS, FLOW_DIM, HIDDEN)
    fused_params = fuse_flow_params(params)

    z, prior_logprob, log_det = nf_forward(x, fused_params)
    jax.block_until_ready((z, prior_logprob, log_det))

    z_r, prior_r, ld_r = nf_forward_ref(x, params)
    assert jnp.allclose(z, z_r, atol=1e-4), "z mismatch"
    assert jnp.allclose(prior_logprob, prior_r, atol=1e-4), "prior_logprob mismatch"
    assert jnp.allclose(log_det, ld_r, atol=1e-4), "log_det mismatch"

    print("KERNEL_OK")
</pallas_src>

<mosaic_0001>
module attributes {stable_mosaic.version = 11 : i64} {
  func.func @_nf_forward_kernel(%arg0: i32, %arg1: memref<8x16xf32, #tpu.memory_space<vmem>>, %arg2: memref<4x8x64xf32, #tpu.memory_space<vmem>>, %arg3: memref<4x1x64xf32, #tpu.memory_space<vmem>>, %arg4: memref<4x64x64xf32, #tpu.memory_space<vmem>>, %arg5: memref<4x1x64xf32, #tpu.memory_space<vmem>>, %arg6: memref<4x64x16xf32, #tpu.memory_space<vmem>>, %arg7: memref<4x1x16xf32, #tpu.memory_space<vmem>>, %arg8: memref<8x16xf32, #tpu.memory_space<vmem>>, %arg9: memref<8x2xf32, #tpu.memory_space<vmem>>) attributes {dimension_semantics = [#tpu.dimension_semantics<parallel>], iteration_bounds = array<i64: 1>, scalar_prefetch = 0 : i64, scratch_operands = 0 : i64, tpu.core_type = #tpu.core_type<tc>, window_params = [{transform_indices = @transform_0, window_bounds = array<i64: 8, 16>}, {pipeline_mode = #tpu.pipeline_mode<synchronous>, transform_indices = @transform_1, window_bounds = array<i64: 4, 8, 64>}, {pipeline_mode = #tpu.pipeline_mode<synchronous>, transform_indices = @transform_2, window_bounds = array<i64: 4, 1, 64>}, {pipeline_mode = #tpu.pipeline_mode<synchronous>, transform_indices = @transform_3, window_bounds = array<i64: 4, 64, 64>}, {pipeline_mode = #tpu.pipeline_mode<synchronous>, transform_indices = @transform_4, window_bounds = array<i64: 4, 1, 64>}, {pipeline_mode = #tpu.pipeline_mode<synchronous>, transform_indices = @transform_5, window_bounds = array<i64: 4, 64, 16>}, {pipeline_mode = #tpu.pipeline_mode<synchronous>, transform_indices = @transform_6, window_bounds = array<i64: 4, 1, 16>}, {transform_indices = @transform_7, window_bounds = array<i64: 8, 16>}, {transform_indices = @transform_8, window_bounds = array<i64: 8, 2>}]} {
    %c0 = arith.constant 0 : index
    %c0_0 = arith.constant 0 : index
    %0 = vector.load %arg1[%c0, %c0_0] : memref<8x16xf32, #tpu.memory_space<vmem>>, vector<8x16xf32>
    %1 = vector.extract_strided_slice %0 {offsets = [0, 0], sizes = [8, 8], strides = [1, 1]} : vector<8x16xf32> to vector<8x8xf32>
    %2 = vector.extract_strided_slice %0 {offsets = [0, 8], sizes = [8, 8], strides = [1, 1]} : vector<8x16xf32> to vector<8x8xf32>
    %cst = arith.constant 0.000000e+00 : f32
    %3 = vector.broadcast %cst : f32 to vector<8x1xf32>
    %c0_1 = arith.constant 0 : index
    %c0_2 = arith.constant 0 : index
    %c0_3 = arith.constant 0 : index
    %4 = vector.load %arg2[%c0_1, %c0_2, %c0_3] : memref<4x8x64xf32, #tpu.memory_space<vmem>>, vector<1x8x64xf32>
    %5 = vector.shape_cast %4 : vector<1x8x64xf32> to vector<8x64xf32>
    %cst_4 = arith.constant dense<0.000000e+00> : vector<8x64xf32>
    %6 = tpu.matmul %1, %5, %cst_4 {dimension_numbers = #tpu.dot_dimension_numbers<[1], [0], [0], [1], [0, 0, 1, 1], [], []>} : vector<8x8xf32>, vector<8x64xf32>, vector<8x64xf32> -> vector<8x64xf32>
    %c0_5 = arith.constant 0 : index
    %c0_6 = arith.constant 0 : index
    %c0_7 = arith.constant 0 : index
    %7 = vector.load %arg3[%c0_5, %c0_6, %c0_7] : memref<4x1x64xf32, #tpu.memory_space<vmem>>, vector<1x1x64xf32>
    %8 = vector.shape_cast %7 : vector<1x1x64xf32> to vector<1x64xf32>
    %9 = vector.broadcast %8 : vector<1x64xf32> to vector<8x64xf32>
    %10 = arith.addf %6, %9 : vector<8x64xf32>
    %11 = math.tanh %10 : vector<8x64xf32>
    %c0_8 = arith.constant 0 : index
    %c0_9 = arith.constant 0 : index
    %c0_10 = arith.constant 0 : index
    %12 = vector.load %arg4[%c0_8, %c0_9, %c0_10] : memref<4x64x64xf32, #tpu.memory_space<vmem>>, vector<1x64x64xf32>
    %13 = vector.shape_cast %12 : vector<1x64x64xf32> to vector<64x64xf32>
    %cst_11 = arith.constant dense<0.000000e+00> : vector<8x64xf32>
    %14 = tpu.matmul %11, %13, %cst_11 {dimension_numbers = #tpu.dot_dimension_numbers<[1], [0], [0], [1], [0, 0, 1, 1], [], []>} : vector<8x64xf32>, vector<64x64xf32>, vector<8x64xf32> -> vector<8x64xf32>
    %c0_12 = arith.constant 0 : index
    %c0_13 = arith.constant 0 : index
    %c0_14 = arith.constant 0 : index
    %15 = vector.load %arg5[%c0_12, %c0_13, %c0_14] : memref<4x1x64xf32, #tpu.memory_space<vmem>>, vector<1x1x64xf32>
    %16 = vector.shape_cast %15 : vector<1x1x64xf32> to vector<1x64xf32>
    %17 = vector.broadcast %16 : vector<1x64xf32> to vector<8x64xf32>
    %18 = arith.addf %14, %17 : vector<8x64xf32>
    %19 = math.tanh %18 : vector<8x64xf32>
    %c0_15 = arith.constant 0 : index
    %c0_16 = arith.constant 0 : index
    %c0_17 = arith.constant 0 : index
    %20 = vector.load %arg6[%c0_15, %c0_16, %c0_17] : memref<4x64x16xf32, #tpu.memory_space<vmem>>, vector<1x64x16xf32>
    %21 = vector.shape_cast %20 : vector<1x64x16xf32> to vector<64x16xf32>
    %cst_18 = arith.constant dense<0.000000e+00> : vector<8x16xf32>
    %22 = tpu.matmul %19, %21, %cst_18 {dimension_numbers = #tpu.dot_dimension_numbers<[1], [0], [0], [1], [0, 0, 1, 1], [], []>} : vector<8x64xf32>, vector<64x16xf32>, vector<8x16xf32> -> vector<8x16xf32>
    %c0_19 = arith.constant 0 : index
    %c0_20 = arith.constant 0 : index
    %c0_21 = arith.constant 0 : index
    %23 = vector.load %arg7[%c0_19, %c0_20, %c0_21] : memref<4x1x16xf32, #tpu.memory_space<vmem>>, vector<1x1x16xf32>
    %24 = vector.shape_cast %23 : vector<1x1x16xf32> to vector<1x16xf32>
    %25 = vector.broadcast %24 : vector<1x16xf32> to vector<8x16xf32>
    %26 = arith.addf %22, %25 : vector<8x16xf32>
    %27 = vector.extract_strided_slice %26 {offsets = [0, 0], sizes = [8, 8], strides = [1, 1]} : vector<8x16xf32> to vector<8x8xf32>
    %28 = vector.extract_strided_slice %26 {offsets = [0, 8], sizes = [8, 8], strides = [1, 1]} : vector<8x16xf32> to vector<8x8xf32>
    %29 = math.exp %28 : vector<8x8xf32>
    %30 = arith.mulf %2, %29 : vector<8x8xf32>
    %31 = arith.addf %27, %30 : vector<8x8xf32>
    %c1 = arith.constant 1 : index
    %c0_22 = arith.constant 0 : index
    %c0_23 = arith.constant 0 : index
    %32 = vector.load %arg2[%c1, %c0_22, %c0_23] : memref<4x8x64xf32, #tpu.memory_space<vmem>>, vector<1x8x64xf32>
    %33 = vector.shape_cast %32 : vector<1x8x64xf32> to vector<8x64xf32>
    %cst_24 = arith.constant dense<0.000000e+00> : vector<8x64xf32>
    %34 = tpu.matmul %31, %33, %cst_24 {dimension_numbers = #tpu.dot_dimension_numbers<[1], [0], [0], [1], [0, 0, 1, 1], [], []>} : vector<8x8xf32>, vector<8x64xf32>, vector<8x64xf32> -> vector<8x64xf32>
    %c1_25 = arith.constant 1 : index
    %c0_26 = arith.constant 0 : index
    %c0_27 = arith.constant 0 : index
    %35 = vector.load %arg3[%c1_25, %c0_26, %c0_27] : memref<4x1x64xf32, #tpu.memory_space<vmem>>, vector<1x1x64xf32>
    %36 = vector.shape_cast %35 : vector<1x1x64xf32> to vector<1x64xf32>
    %37 = vector.broadcast %36 : vector<1x64xf32> to vector<8x64xf32>
    %38 = arith.addf %34, %37 : vector<8x64xf32>
    %39 = math.tanh %38 : vector<8x64xf32>
    %c1_28 = arith.constant 1 : index
    %c0_29 = arith.constant 0 : index
    %c0_30 = arith.constant 0 : index
    %40 = vector.load %arg4[%c1_28, %c0_29, %c0_30] : memref<4x64x64xf32, #tpu.memory_space<vmem>>, vector<1x64x64xf32>
    %41 = vector.shape_cast %40 : vector<1x64x64xf32> to vector<64x64xf32>
    %cst_31 = arith.constant dense<0.000000e+00> : vector<8x64xf32>
    %42 = tpu.matmul %39, %41, %cst_31 {dimension_numbers = #tpu.dot_dimension_numbers<[1], [0], [0], [1], [0, 0, 1, 1], [], []>} : vector<8x64xf32>, vector<64x64xf32>, vector<8x64xf32> -> vector<8x64xf32>
    %c1_32 = arith.constant 1 : index
    %c0_33 = arith.constant 0 : index
    %c0_34 = arith.constant 0 : index
    %43 = vector.load %arg5[%c1_32, %c0_33, %c0_34] : memref<4x1x64xf32, #tpu.memory_space<vmem>>, vector<1x1x64xf32>
    %44 = vector.shape_cast %43 : vector<1x1x64xf32> to vector<1x64xf32>
    %45 = vector.broadcast %44 : vector<1x64xf32> to vector<8x64xf32>
    %46 = arith.addf %42, %45 : vector<8x64xf32>
    %47 = math.tanh %46 : vector<8x64xf32>
    %c1_35 = arith.constant 1 : index
    %c0_36 = arith.constant 0 : index
    %c0_37 = arith.constant 0 : index
    %48 = vector.load %arg6[%c1_35, %c0_36, %c0_37] : memref<4x64x16xf32, #tpu.memory_space<vmem>>, vector<1x64x16xf32>
    %49 = vector.shape_cast %48 : vector<1x64x16xf32> to vector<64x16xf32>
    %cst_38 = arith.constant dense<0.000000e+00> : vector<8x16xf32>
    %50 = tpu.matmul %47, %49, %cst_38 {dimension_numbers = #tpu.dot_dimension_numbers<[1], [0], [0], [1], [0, 0, 1, 1], [], []>} : vector<8x64xf32>, vector<64x16xf32>, vector<8x16xf32> -> vector<8x16xf32>
    %c1_39 = arith.constant 1 : index
    %c0_40 = arith.constant 0 : index
    %c0_41 = arith.constant 0 : index
    %51 = vector.load %arg7[%c1_39, %c0_40, %c0_41] : memref<4x1x16xf32, #tpu.memory_space<vmem>>, vector<1x1x16xf32>
    %52 = vector.shape_cast %51 : vector<1x1x16xf32> to vector<1x16xf32>
    %53 = vector.broadcast %52 : vector<1x16xf32> to vector<8x16xf32>
    %54 = arith.addf %50, %53 : vector<8x16xf32>
    %55 = vector.extract_strided_slice %54 {offsets = [0, 0], sizes = [8, 8], strides = [1, 1]} : vector<8x16xf32> to vector<8x8xf32>
    %56 = vector.extract_strided_slice %54 {offsets = [0, 8], sizes = [8, 8], strides = [1, 1]} : vector<8x16xf32> to vector<8x8xf32>
    %57 = math.exp %56 : vector<8x8xf32>
    %58 = arith.mulf %1, %57 : vector<8x8xf32>
    %59 = arith.addf %55, %58 : vector<8x8xf32>
    %cst_42 = arith.constant dense<0.000000e+00> : vector<8xf32>
    %60 = vector.multi_reduction <add>, %28, %cst_42 [1] : vector<8x8xf32> to vector<8xf32>
    %61 = vector.shape_cast %60 : vector<8xf32> to vector<8x1xf32>
    %62 = arith.addf %3, %61 : vector<8x1xf32>
    %cst_43 = arith.constant dense<0.000000e+00> : vector<8xf32>
    %63 = vector.multi_reduction <add>, %56, %cst_43 [1] : vector<8x8xf32> to vector<8xf32>
    %64 = vector.shape_cast %63 : vector<8xf32> to vector<8x1xf32>
    %65 = arith.addf %62, %64 : vector<8x1xf32>
    %c2 = arith.constant 2 : index
    %c0_44 = arith.constant 0 : index
    %c0_45 = arith.constant 0 : index
    %66 = vector.load %arg2[%c2, %c0_44, %c0_45] : memref<4x8x64xf32, #tpu.memory_space<vmem>>, vector<1x8x64xf32>
    %67 = vector.shape_cast %66 : vector<1x8x64xf32> to vector<8x64xf32>
    %cst_46 = arith.constant dense<0.000000e+00> : vector<8x64xf32>
    %68 = tpu.matmul %59, %67, %cst_46 {dimension_numbers = #tpu.dot_dimension_numbers<[1], [0], [0], [1], [0, 0, 1, 1], [], []>} : vector<8x8xf32>, vector<8x64xf32>, vector<8x64xf32> -> vector<8x64xf32>
    %c2_47 = arith.constant 2 : index
    %c0_48 = arith.constant 0 : index
    %c0_49 = arith.constant 0 : index
    %69 = vector.load %arg3[%c2_47, %c0_48, %c0_49] : memref<4x1x64xf32, #tpu.memory_space<vmem>>, vector<1x1x64xf32>
    %70 = vector.shape_cast %69 : vector<1x1x64xf32> to vector<1x64xf32>
    %71 = vector.broadcast %70 : vector<1x64xf32> to vector<8x64xf32>
    %72 = arith.addf %68, %71 : vector<8x64xf32>
    %73 = math.tanh %72 : vector<8x64xf32>
    %c2_50 = arith.constant 2 : index
    %c0_51 = arith.constant 0 : index
    %c0_52 = arith.constant 0 : index
    %74 = vector.load %arg4[%c2_50, %c0_51, %c0_52] : memref<4x64x64xf32, #tpu.memory_space<vmem>>, vector<1x64x64xf32>
    %75 = vector.shape_cast %74 : vector<1x64x64xf32> to vector<64x64xf32>
    %cst_53 = arith.constant dense<0.000000e+00> : vector<8x64xf32>
    %76 = tpu.matmul %73, %75, %cst_53 {dimension_numbers = #tpu.dot_dimension_numbers<[1], [0], [0], [1], [0, 0, 1, 1], [], []>} : vector<8x64xf32>, vector<64x64xf32>, vector<8x64xf32> -> vector<8x64xf32>
    %c2_54 = arith.constant 2 : index
    %c0_55 = arith.constant 0 : index
    %c0_56 = arith.constant 0 : index
    %77 = vector.load %arg5[%c2_54, %c0_55, %c0_56] : memref<4x1x64xf32, #tpu.memory_space<vmem>>, vector<1x1x64xf32>
    %78 = vector.shape_cast %77 : vector<1x1x64xf32> to vector<1x64xf32>
    %79 = vector.broadcast %78 : vector<1x64xf32> to vector<8x64xf32>
    %80 = arith.addf %76, %79 : vector<8x64xf32>
    %81 = math.tanh %80 : vector<8x64xf32>
    %c2_57 = arith.constant 2 : index
    %c0_58 = arith.constant 0 : index
    %c0_59 = arith.constant 0 : index
    %82 = vector.load %arg6[%c2_57, %c0_58, %c0_59] : memref<4x64x16xf32, #tpu.memory_space<vmem>>, vector<1x64x16xf32>
    %83 = vector.shape_cast %82 : vector<1x64x16xf32> to vector<64x16xf32>
    %cst_60 = arith.constant dense<0.000000e+00> : vector<8x16xf32>
    %84 = tpu.matmul %81, %83, %cst_60 {dimension_numbers = #tpu.dot_dimension_numbers<[1], [0], [0], [1], [0, 0, 1, 1], [], []>} : vector<8x64xf32>, vector<64x16xf32>, vector<8x16xf32> -> vector<8x16xf32>
    %c2_61 = arith.constant 2 : index
    %c0_62 = arith.constant 0 : index
    %c0_63 = arith.constant 0 : index
    %85 = vector.load %arg7[%c2_61, %c0_62, %c0_63] : memref<4x1x16xf32, #tpu.memory_space<vmem>>, vector<1x1x16xf32>
    %86 = vector.shape_cast %85 : vector<1x1x16xf32> to vector<1x16xf32>
    %87 = vector.broadcast %86 : vector<1x16xf32> to vector<8x16xf32>
    %88 = arith.addf %84, %87 : vector<8x16xf32>
    %89 = vector.extract_strided_slice %88 {offsets = [0, 0], sizes = [8, 8], strides = [1, 1]} : vector<8x16xf32> to vector<8x8xf32>
    %90 = vector.extract_strided_slice %88 {offsets = [0, 8], sizes = [8, 8], strides = [1, 1]} : vector<8x16xf32> to vector<8x8xf32>
    %91 = math.exp %90 : vector<8x8xf32>
    %92 = arith.mulf %31, %91 : vector<8x8xf32>
    %93 = arith.addf %89, %92 : vector<8x8xf32>
    %c3 = arith.constant 3 : index
    %c0_64 = arith.constant 0 : index
    %c0_65 = arith.constant 0 : index
    %94 = vector.load %arg2[%c3, %c0_64, %c0_65] : memref<4x8x64xf32, #tpu.memory_space<vmem>>, vector<1x8x64xf32>
    %95 = vector.shape_cast %94 : vector<1x8x64xf32> to vector<8x64xf32>
    %cst_66 = arith.constant dense<0.000000e+00> : vector<8x64xf32>
    %96 = tpu.matmul %93, %95, %cst_66 {dimension_numbers = #tpu.dot_dimension_numbers<[1], [0], [0], [1], [0, 0, 1, 1], [], []>} : vector<8x8xf32>, vector<8x64xf32>, vector<8x64xf32> -> vector<8x64xf32>
    %c3_67 = arith.constant 3 : index
    %c0_68 = arith.constant 0 : index
    %c0_69 = arith.constant 0 : index
    %97 = vector.load %arg3[%c3_67, %c0_68, %c0_69] : memref<4x1x64xf32, #tpu.memory_space<vmem>>, vector<1x1x64xf32>
    %98 = vector.shape_cast %97 : vector<1x1x64xf32> to vector<1x64xf32>
    %99 = vector.broadcast %98 : vector<1x64xf32> to vector<8x64xf32>
    %100 = arith.addf %96, %99 : vector<8x64xf32>
    %101 = math.tanh %100 : vector<8x64xf32>
    %c3_70 = arith.constant 3 : index
    %c0_71 = arith.constant 0 : index
    %c0_72 = arith.constant 0 : index
    %102 = vector.load %arg4[%c3_70, %c0_71, %c0_72] : memref<4x64x64xf32, #tpu.memory_space<vmem>>, vector<1x64x64xf32>
    %103 = vector.shape_cast %102 : vector<1x64x64xf32> to vector<64x64xf32>
    %cst_73 = arith.constant dense<0.000000e+00> : vector<8x64xf32>
    %104 = tpu.matmul %101, %103, %cst_73 {dimension_numbers = #tpu.dot_dimension_numbers<[1], [0], [0], [1], [0, 0, 1, 1], [], []>} : vector<8x64xf32>, vector<64x64xf32>, vector<8x64xf32> -> vector<8x64xf32>
    %c3_74 = arith.constant 3 : index
    %c0_75 = arith.constant 0 : index
    %c0_76 = arith.constant 0 : index
    %105 = vector.load %arg5[%c3_74, %c0_75, %c0_76] : memref<4x1x64xf32, #tpu.memory_space<vmem>>, vector<1x1x64xf32>
    %106 = vector.shape_cast %105 : vector<1x1x64xf32> to vector<1x64xf32>
    %107 = vector.broadcast %106 : vector<1x64xf32> to vector<8x64xf32>
    %108 = arith.addf %104, %107 : vector<8x64xf32>
    %109 = math.tanh %108 : vector<8x64xf32>
    %c3_77 = arith.constant 3 : index
    %c0_78 = arith.constant 0 : index
    %c0_79 = arith.constant 0 : index
    %110 = vector.load %arg6[%c3_77, %c0_78, %c0_79] : memref<4x64x16xf32, #tpu.memory_space<vmem>>, vector<1x64x16xf32>
    %111 = vector.shape_cast %110 : vector<1x64x16xf32> to vector<64x16xf32>
    %cst_80 = arith.constant dense<0.000000e+00> : vector<8x16xf32>
    %112 = tpu.matmul %109, %111, %cst_80 {dimension_numbers = #tpu.dot_dimension_numbers<[1], [0], [0], [1], [0, 0, 1, 1], [], []>} : vector<8x64xf32>, vector<64x16xf32>, vector<8x16xf32> -> vector<8x16xf32>
    %c3_81 = arith.constant 3 : index
    %c0_82 = arith.constant 0 : index
    %c0_83 = arith.constant 0 : index
    %113 = vector.load %arg7[%c3_81, %c0_82, %c0_83] : memref<4x1x16xf32, #tpu.memory_space<vmem>>, vector<1x1x16xf32>
    %114 = vector.shape_cast %113 : vector<1x1x16xf32> to vector<1x16xf32>
    %115 = vector.broadcast %114 : vector<1x16xf32> to vector<8x16xf32>
    %116 = arith.addf %112, %115 : vector<8x16xf32>
    %117 = vector.extract_strided_slice %116 {offsets = [0, 0], sizes = [8, 8], strides = [1, 1]} : vector<8x16xf32> to vector<8x8xf32>
    %118 = vector.extract_strided_slice %116 {offsets = [0, 8], sizes = [8, 8], strides = [1, 1]} : vector<8x16xf32> to vector<8x8xf32>
    %119 = math.exp %118 : vector<8x8xf32>
    %120 = arith.mulf %59, %119 : vector<8x8xf32>
    %121 = arith.addf %117, %120 : vector<8x8xf32>
    %cst_84 = arith.constant dense<0.000000e+00> : vector<8xf32>
    %122 = vector.multi_reduction <add>, %90, %cst_84 [1] : vector<8x8xf32> to vector<8xf32>
    %123 = vector.shape_cast %122 : vector<8xf32> to vector<8x1xf32>
    %124 = arith.addf %65, %123 : vector<8x1xf32>
    %cst_85 = arith.constant dense<0.000000e+00> : vector<8xf32>
    %125 = vector.multi_reduction <add>, %118, %cst_85 [1] : vector<8x8xf32> to vector<8xf32>
    %126 = vector.shape_cast %125 : vector<8xf32> to vector<8x1xf32>
    %127 = arith.addf %124, %126 : vector<8x1xf32>
    %128 = tpu.concatenate %121, %93 in 1 : vector<8x8xf32>, vector<8x8xf32> -> vector<8x16xf32>
    %c0_86 = arith.constant 0 : index
    %c0_87 = arith.constant 0 : index
    %129 = vector.load %arg8[%c0_86, %c0_87] : memref<8x16xf32, #tpu.memory_space<vmem>>, vector<8x16xf32>
    tpu.vector_store %arg8[%c0_86, %c0_87], %128 {strides = array<i32>} : memref<8x16xf32, #tpu.memory_space<vmem>>, vector<8x16xf32>,
    %cst_88 = arith.constant -5.000000e-01 : f32
    %130 = vector.broadcast %cst_88 : f32 to vector<8x16xf32>
    %131 = arith.mulf %130, %128 : vector<8x16xf32>
    %132 = arith.mulf %131, %128 : vector<8x16xf32>
    %cst_89 = arith.constant 0.918938517 : f32
    %133 = vector.broadcast %cst_89 : f32 to vector<8x16xf32>
    %134 = arith.subf %132, %133 : vector<8x16xf32>
    %cst_90 = arith.constant dense<0.000000e+00> : vector<8xf32>
    %135 = vector.multi_reduction <add>, %134, %cst_90 [1] : vector<8x16xf32> to vector<8xf32>
    %136 = vector.shape_cast %135 : vector<8xf32> to vector<8x1xf32>
    %137 = tpu.concatenate %136, %127 in 1 : vector<8x1xf32>, vector<8x1xf32> -> vector<8x2xf32>
    %c0_91 = arith.constant 0 : index
    %c0_92 = arith.constant 0 : index
    %138 = vector.load %arg9[%c0_91, %c0_92] : memref<8x2xf32, #tpu.memory_space<vmem>>, vector<8x2xf32>
    tpu.vector_store %arg9[%c0_91, %c0_92], %137 {strides = array<i32>} : memref<8x2xf32, #tpu.memory_space<vmem>>, vector<8x2xf32>,
    return
  }
  func.func @transform_0(%arg0: i32) -> (i32, i32) {
    %c0_i32 = arith.constant 0 : i32
    %c0_i32_0 = arith.constant 0 : i32
    return %arg0, %c0_i32 : i32, i32
  }
  func.func @transform_1(%arg0: i32) -> (i32, i32, i32) {
    %c0_i32 = arith.constant 0 : i32
    %c0_i32_0 = arith.constant 0 : i32
    %c0_i32_1 = arith.constant 0 : i32
    %c0_i32_2 = arith.constant 0 : i32
    return %c0_i32, %c0_i32_0, %c0_i32_1 : i32, i32, i32
  }
  func.func @transform_2(%arg0: i32) -> (i32, i32, i32) {
    %c0_i32 = arith.constant 0 : i32
    %c0_i32_0 = arith.constant 0 : i32
    %c0_i32_1 = arith.constant 0 : i32
    %c0_i32_2 = arith.constant 0 : i32
    return %c0_i32, %c0_i32_0, %c0_i32_1 : i32, i32, i32
  }
  func.func @transform_3(%arg0: i32) -> (i32, i32, i32) {
    %c0_i32 = arith.constant 0 : i32
    %c0_i32_0 = arith.constant 0 : i32
    %c0_i32_1 = arith.constant 0 : i32
    %c0_i32_2 = arith.constant 0 : i32
    return %c0_i32, %c0_i32_0, %c0_i32_1 : i32, i32, i32
  }
  func.func @transform_4(%arg0: i32) -> (i32, i32, i32) {
    %c0_i32 = arith.constant 0 : i32
    %c0_i32_0 = arith.constant 0 : i32
    %c0_i32_1 = arith.constant 0 : i32
    %c0_i32_2 = arith.constant 0 : i32
    return %c0_i32, %c0_i32_0, %c0_i32_1 : i32, i32, i32
  }
  func.func @transform_5(%arg0: i32) -> (i32, i32, i32) {
    %c0_i32 = arith.constant 0 : i32
    %c0_i32_0 = arith.constant 0 : i32
    %c0_i32_1 = arith.constant 0 : i32
    %c0_i32_2 = arith.constant 0 : i32
    return %c0_i32, %c0_i32_0, %c0_i32_1 : i32, i32, i32
  }
  func.func @transform_6(%arg0: i32) -> (i32, i32, i32) {
    %c0_i32 = arith.constant 0 : i32
    %c0_i32_0 = arith.constant 0 : i32
    %c0_i32_1 = arith.constant 0 : i32
    %c0_i32_2 = arith.constant 0 : i32
    return %c0_i32, %c0_i32_0, %c0_i32_1 : i32, i32, i32
  }
  func.func @transform_7(%arg0: i32) -> (i32, i32) {
    %c0_i32 = arith.constant 0 : i32
    %c0_i32_0 = arith.constant 0 : i32
    return %arg0, %c0_i32 : i32, i32
  }
  func.func @transform_8(%arg0: i32) -> (i32, i32) {
    %c0_i32 = arith.constant 0 : i32
    %c0_i32_0 = arith.constant 0 : i32
    return %arg0, %c0_i32 : i32, i32
  }
}

</mosaic_0001>

<llo_original>
// kernel: tpu_custom_call.1
$region0: #{tpu_custom_call.1}
  #allocation0 [shape = 'u32[]', space=smem, size = 0x4, offset = 0x4, fixed_abs, tag = 'smem constant byte address 0x4 - core index']
  #allocation1 [shape = 'u32[144,128]{1,0:T(1,128)}', space=vmem, size = 0x12000, scoped, tag = 'internal scratch']
  %s0 = inlined_call_operand.vmem [shape: f32[8,16], index: 0, kind: input, shape index: {}]
  %s1 = inlined_call_operand.vmem [shape: f32[4,8,64], index: 1, kind: input, shape index: {}]
  %s2 = inlined_call_operand.vmem [shape: f32[4,1,64], index: 2, kind: input, shape index: {}]
  %s3 = inlined_call_operand.vmem [shape: f32[4,64,64], index: 3, kind: input, shape index: {}]
  %s4 = inlined_call_operand.vmem [shape: f32[4,1,64], index: 4, kind: input, shape index: {}]
  %s5 = inlined_call_operand.vmem [shape: f32[4,64,16], index: 5, kind: input, shape index: {}]
  %s6 = inlined_call_operand.vmem [shape: f32[4,1,16], index: 6, kind: input, shape index: {}]
  %s7 = inlined_call_operand.hbm [shape: f32[8,16], index: 7, kind: output, shape index: {0}]
  %s8 = inlined_call_operand.vmem [shape: f32[8,2], index: 8, kind: output, shape index: {1}]
  %9 = xla_tuple %s7, %s8
  %s10 = sld [smem:[#allocation0]]
  $region46: #{tpu_custom_call.1} parent=0
    _
  %s12 = ssub.s32 1, %s10
  %s13 = scalar_select 0, %s12, %s10
  $region1: #{tpu_custom_call.1} parent=0
    #allocation2 [shape = 'u8[4096]{0}', space=vmem, size = 0x1000, scoped, tag = 'output window, operand 0, single buffered']
    #allocation3 [shape = 's32[1]{0}', space=sflag, size = 0x4, scoped, tag = 'scoped memory for tpu_custom_call.1']
    %14 = vsyncpa [#allocation3], 0
    // Predicated region
    $region2: #{tpu_custom_call.1} parent=1 // pred_check
      _
    $region3: #{tpu_custom_call.1} parent=1 // pred_check_branch
      %16 = sbr.rel (0) target = $region5
    $region4: #{tpu_custom_call.1} parent=1 // pred_region
      _
    $region5: #{tpu_custom_call.1} parent=1 // pred_fallthru
      _
    // Predicated region
    $region6: #{tpu_custom_call.1} parent=1 // pred_check
      _
    $region7: #{tpu_custom_call.1} parent=1 // pred_check_branch
      %18 = sbr.rel (0) target = $region9
    $region8: #{tpu_custom_call.1} parent=1 // pred_region
      _
    $region9: #{tpu_custom_call.1} parent=1 // pred_fallthru
      _
    // Predicated region
    $region10: #{tpu_custom_call.1} parent=1 // pred_check
      _
    $region11: #{tpu_custom_call.1} parent=1 // pred_check_branch
      %20 = sbr.rel (0) target = $region13
    $region12: #{tpu_custom_call.1} parent=1 // pred_region
      _
    $region13: #{tpu_custom_call.1} parent=1 // pred_fallthru
      _
    // Predicated region
    $region14: #{tpu_custom_call.1} parent=1 // pred_check
      _
    $region15: #{tpu_custom_call.1} parent=1 // pred_check_branch
      %22 = sbr.rel (0) target = $region17
    $region16: #{tpu_custom_call.1} parent=1 // pred_region
      _
    $region17: #{tpu_custom_call.1} parent=1 // pred_fallthru
      _
    // Predicated region
    $region18: #{tpu_custom_call.1} parent=1 // pred_check
      _
    $region19: #{tpu_custom_call.1} parent=1 // pred_check_branch
      %24 = sbr.rel (0) target = $region21
    $region20: #{tpu_custom_call.1} parent=1 // pred_region
      _
    $region21: #{tpu_custom_call.1} parent=1 // pred_fallthru
      _
    // Predicated region
    $region22: #{tpu_custom_call.1} parent=1 // pred_check
      _
    $region23: #{tpu_custom_call.1} parent=1 // pred_check_branch
      %26 = sbr.rel (0) target = $region25
    $region24: #{tpu_custom_call.1} parent=1 // pred_region
      _
    $region25: #{tpu_custom_call.1} parent=1 // pred_fallthru
      _
    // Predicated region
    $region26: #{tpu_custom_call.1} parent=1 // pred_check
      _
    $region27: #{tpu_custom_call.1} parent=1 // pred_check_branch
      %28 = sbr.rel (0) target = $region29
    $region28: #{tpu_custom_call.1} parent=1 // pred_region
      _
    $region29: #{tpu_custom_call.1} parent=1 // pred_fallthru
      _
    %v29 = vld [vmem:[%s0] sm:$0xff]
    %v30 = vld [vmem:[%s1] sm:$0xff]
    %v31 = vld [vmem:[%s2] sm:$0x1]
    %v33 = vlaneseq
    %v34 = vshrl.u32 %v33, 7
    %v35 = vsub.s32 0, %v34
    %v36 = vrot.slane %v31, %v35
    %vm38 = vcmask 64512
    %v40 = vsel %vm38, %v29, 0
    %42 = vmatprep.subr.mxu0 0.0
    %43 = vmatpush1.msra.mxu0 %v30
    %44 = vmatprep.subr.mxu0 0.0
    %45 = vmatpush1.msra.mxu0 0.0
    %46 = vmatprep.subr.mxu0 0.0
    %47 = vmatpush1.msra.mxu0 0.0
    %48 = vmatprep.subr.mxu0 0.0
    %49 = vmatpush1.msra.mxu0 0.0
    %50 = vmatprep.subr.mxu0 0.0
    %51 = vmatpush1.msra.mxu0 0.0
    %52 = vmatprep.subr.mxu0 0.0
    %53 = vmatpush1.msra.mxu0 0.0
    %54 = vmatprep.subr.mxu0 0.0
    %55 = vmatpush1.msra.mxu0 0.0
    %56 = vmatprep.subr.mxu0 0.0
    %57 = vmatpush1.msra.mxu0 0.0
    %58 = vmatprep.subr.mxu0 0.0
    %59 = vmatpush1.msra.mxu0 0.0
    %60 = vmatprep.subr.mxu0 0.0
    %61 = vmatpush1.msra.mxu0 0.0
    %62 = vmatprep.subr.mxu0 0.0
    %63 = vmatpush1.msra.mxu0 0.0
    %64 = vmatprep.subr.mxu0 0.0
    %65 = vmatpush1.msra.mxu0 0.0
    %66 = vmatprep.subr.mxu0 0.0
    %67 = vmatpush1.msra.mxu0 0.0
    %68 = vmatprep.subr.mxu0 0.0
    %69 = vmatpush1.msra.mxu0 0.0
    %70 = vmatprep.subr.mxu0 0.0
    %71 = vmatpush1.msra.mxu0 0.0
    %72 = vmatprep.subr.mxu0 0.0
    %73 = vmatpush1.msra.mxu0 0.0
    %74 = vmatprep.subr.mxu0 0.0
    %75 = vmatpush1.msra.mxu0 0.0
    %76 = vmatprep.subr.mxu0 0.0
    %77 = vmatpush1.msra.mxu0 0.0
    %78 = vmatprep.subr.mxu0 0.0
    %79 = vmatpush1.msra.mxu0 0.0
    %80 = vmatprep.subr.mxu0 0.0
    %81 = vmatpush1.msra.mxu0 0.0
    %82 = vmatprep.subr.mxu0 0.0
    %83 = vmatpush1.msra.mxu0 0.0
    %84 = vmatprep.subr.mxu0 0.0
    %85 = vmatpush1.msra.mxu0 0.0
    %86 = vmatprep.subr.mxu0 0.0
    %87 = vmatpush1.msra.mxu0 0.0
    %88 = vmatprep.subr.mxu0 0.0
    %89 = vmatpush1.msra.mxu0 0.0
    %90 = vmatprep.subr.mxu0 0.0
    %91 = vmatpush1.msra.mxu0 0.0
    %92 = vmatprep.subr.mxu0 0.0
    %93 = vmatpush1.msra.mxu0 0.0
    %94 = vmatprep.subr.mxu0 0.0
    %95 = vmatpush1.msra.mxu0 0.0
    %96 = vmatprep.subr.mxu0 0.0
    %97 = vmatpush1.msra.mxu0 0.0
    %98 = vmatprep.subr.mxu0 0.0
    %99 = vmatpush1.msra.mxu0 0.0
    %100 = vmatprep.subr.mxu0 0.0
    %101 = vmatpush1.msra.mxu0 0.0
    %102 = vmatprep.subr.mxu0 0.0
    %103 = vmatpush1.msra.mxu0 0.0
    %104 = vmatprep.subr.mxu0 0.0
    %105 = vmatpush1.msra.mxu0 0.0
    %106 = vmatprep.mubr.f32.mxu0 0.0
    %107 = vmatmul.mubr.f32.gmra.mrb[0].mxu0 %v40
    %v108 = vpop.f32.mrb[0].mxu0
    %v109 = vadd.f32 %v36, %v108
    %v110 = vpop.f32.mrb[0].mxu0
    %111 = vdwg.mxu0
    %v112 = vtanh.pop %v109
    %v113 = vld [vmem:[%s3] sm:$0xff]
    %v114 = vld [vmem:[%s3 + $0x8] sm:$0xff]
    %v115 = vld [vmem:[%s3 + $0x10] sm:$0xff]
    %v116 = vld [vmem:[%s3 + $0x18] sm:$0xff]
    %v117 = vld [vmem:[%s3 + $0x20] sm:$0xff]
    %v118 = vld [vmem:[%s3 + $0x28] sm:$0xff]
    %v119 = vld [vmem:[%s3 + $0x30] sm:$0xff]
    %v120 = vld [vmem:[%s3 + $0x38] sm:$0xff]
    %v121 = vld [vmem:[%s4] sm:$0x1]
    %v123 = vlaneseq
    %v124 = vshrl.u32 %v123, 7
    %v125 = vsub.s32 0, %v124
    %v126 = vrot.slane %v121, %v125
    %vm128 = vcmask 523264
    %v130 = vsel %vm128, %v112, 0
    %132 = vmatprep.subr.mxu0 0.0
    %133 = vmatpush1.msra.mxu0 %v113
    %134 = vmatprep.subr.mxu0 0.0
    %135 = vmatpush1.msra.mxu0 %v114
    %136 = vmatprep.subr.mxu0 0.0
    %137 = vmatpush1.msra.mxu0 %v115
    %138 = vmatprep.subr.mxu0 0.0
    %139 = vmatpush1.msra.mxu0 %v116
    %140 = vmatprep.subr.mxu0 0.0
    %141 = vmatpush1.msra.mxu0 %v117
    %142 = vmatprep.subr.mxu0 0.0
    %143 = vmatpush1.msra.mxu0 %v118
    %144 = vmatprep.subr.mxu0 0.0
    %145 = vmatpush1.msra.mxu0 %v119
    %146 = vmatprep.subr.mxu0 0.0
    %147 = vmatpush1.msra.mxu0 %v120
    %148 = vmatprep.subr.mxu0 0.0
    %149 = vmatpush1.msra.mxu0 0.0
    %150 = vmatprep.subr.mxu0 0.0
    %151 = vmatpush1.msra.mxu0 0.0
    %152 = vmatprep.subr.mxu0 0.0
    %153 = vmatpush1.msra.mxu0 0.0
    %154 = vmatprep.subr.mxu0 0.0
    %155 = vmatpush1.msra.mxu0 0.0
    %156 = vmatprep.subr.mxu0 0.0
    %157 = vmatpush1.msra.mxu0 0.0
    %158 = vmatprep.subr.mxu0 0.0
    %159 = vmatpush1.msra.mxu0 0.0
    %160 = vmatprep.subr.mxu0 0.0
    %161 = vmatpush1.msra.mxu0 0.0
    %162 = vmatprep.subr.mxu0 0.0
    %163 = vmatpush1.msra.mxu0 0.0
    %164 = vmatprep.subr.mxu0 0.0
    %165 = vmatpush1.msra.mxu0 0.0
    %166 = vmatprep.subr.mxu0 0.0
    %167 = vmatpush1.msra.mxu0 0.0
    %168 = vmatprep.subr.mxu0 0.0
    %169 = vmatpush1.msra.mxu0 0.0
    %170 = vmatprep.subr.mxu0 0.0
    %171 = vmatpush1.msra.mxu0 0.0
    %172 = vmatprep.subr.mxu0 0.0
    %173 = vmatpush1.msra.mxu0 0.0
    %174 = vmatprep.subr.mxu0 0.0
    %175 = vmatpush1.msra.mxu0 0.0
    %176 = vmatprep.subr.mxu0 0.0
    %177 = vmatpush1.msra.mxu0 0.0
    %178 = vmatprep.subr.mxu0 0.0
    %179 = vmatpush1.msra.mxu0 0.0
    %180 = vmatprep.subr.mxu0 0.0
    %181 = vmatpush1.msra.mxu0 0.0
    %182 = vmatprep.subr.mxu0 0.0
    %183 = vmatpush1.msra.mxu0 0.0
    %184 = vmatprep.subr.mxu0 0.0
    %185 = vmatpush1.msra.mxu0 0.0
    %186 = vmatprep.subr.mxu0 0.0
    %187 = vmatpush1.msra.mxu0 0.0
    %188 = vmatprep.subr.mxu0 0.0
    %189 = vmatpush1.msra.mxu0 0.0
    %190 = vmatprep.subr.mxu0 0.0
    %191 = vmatpush1.msra.mxu0 0.0
    %192 = vmatprep.subr.mxu0 0.0
    %193 = vmatpush1.msra.mxu0 0.0
    %194 = vmatprep.subr.mxu0 0.0
    %195 = vmatpush1.msra.mxu0 0.0
    %196 = vmatprep.mubr.f32.mxu0 0.0
    %197 = vmatmul.mubr.f32.gmra.mrb[0].mxu0 %v130
    %v198 = vpop.f32.mrb[0].mxu0
    %v199 = vadd.f32 %v126, %v198
    %v200 = vpop.f32.mrb[0].mxu0
    %201 = vdwg.mxu0
    %v202 = vtanh.pop %v199
    %v203 = vld [vmem:[%s5] sm:$0xff]
    %v204 = vld [vmem:[%s5 + $0x8] sm:$0xff]
    %v205 = vld [vmem:[%s5 + $0x10] sm:$0xff]
    %v206 = vld [vmem:[%s5 + $0x18] sm:$0xff]
    %v207 = vld [vmem:[%s5 + $0x20] sm:$0xff]
    %v208 = vld [vmem:[%s5 + $0x28] sm:$0xff]
    %v209 = vld [vmem:[%s5 + $0x30] sm:$0xff]
    %v210 = vld [vmem:[%s5 + $0x38] sm:$0xff]
    %v211 = vld [vmem:[%s6] sm:$0x1]
    %v213 = vlaneseq
    %v214 = vshrl.u32 %v213, 7
    %v215 = vsub.s32 0, %v214
    %v216 = vrot.slane %v211, %v215
    %v219 = vsel %vm128, %v202, 0
    %221 = vmatprep.subr.mxu0 0.0
    %222 = vmatpush1.msra.mxu0 %v203
    %223 = vmatprep.subr.mxu0 0.0
    %224 = vmatpush1.msra.mxu0 %v204
    %225 = vmatprep.subr.mxu0 0.0
    %226 = vmatpush1.msra.mxu0 %v205
    %227 = vmatprep.subr.mxu0 0.0
    %228 = vmatpush1.msra.mxu0 %v206
    %229 = vmatprep.subr.mxu0 0.0
    %230 = vmatpush1.msra.mxu0 %v207
    %231 = vmatprep.subr.mxu0 0.0
    %232 = vmatpush1.msra.mxu0 %v208
    %233 = vmatprep.subr.mxu0 0.0
    %234 = vmatpush1.msra.mxu0 %v209
    %235 = vmatprep.subr.mxu0 0.0
    %236 = vmatpush1.msra.mxu0 %v210
    %237 = vmatprep.subr.mxu0 0.0
    %238 = vmatpush1.msra.mxu0 0.0
    %239 = vmatprep.subr.mxu0 0.0
    %240 = vmatpush1.msra.mxu0 0.0
    %241 = vmatprep.subr.mxu0 0.0
    %242 = vmatpush1.msra.mxu0 0.0
    %243 = vmatprep.subr.mxu0 0.0
    %244 = vmatpush1.msra.mxu0 0.0
    %245 = vmatprep.subr.mxu0 0.0
    %246 = vmatpush1.msra.mxu0 0.0
    %247 = vmatprep.subr.mxu0 0.0
    %248 = vmatpush1.msra.mxu0 0.0
    %249 = vmatprep.subr.mxu0 0.0
    %250 = vmatpush1.msra.mxu0 0.0
    %251 = vmatprep.subr.mxu0 0.0
    %252 = vmatpush1.msra.mxu0 0.0
    %253 = vmatprep.subr.mxu0 0.0
    %254 = vmatpush1.msra.mxu0 0.0
    %255 = vmatprep.subr.mxu0 0.0
    %256 = vmatpush1.msra.mxu0 0.0
    %257 = vmatprep.subr.mxu0 0.0
    %258 = vmatpush1.msra.mxu0 0.0
    %259 = vmatprep.subr.mxu0 0.0
    %260 = vmatpush1.msra.mxu0 0.0
    %261 = vmatprep.subr.mxu0 0.0
    %262 = vmatpush1.msra.mxu0 0.0
    %263 = vmatprep.subr.mxu0 0.0
    %264 = vmatpush1.msra.mxu0 0.0
    %265 = vmatprep.subr.mxu0 0.0
    %266 = vmatpush1.msra.mxu0 0.0
    %267 = vmatprep.subr.mxu0 0.0
    %268 = vmatpush1.msra.mxu0 0.0
    %269 = vmatprep.subr.mxu0 0.0
    %270 = vmatpush1.msra.mxu0 0.0
    %271 = vmatprep.subr.mxu0 0.0
    %272 = vmatpush1.msra.mxu0 0.0
    %273 = vmatprep.subr.mxu0 0.0
    %274 = vmatpush1.msra.mxu0 0.0
    %275 = vmatprep.subr.mxu0 0.0
    %276 = vmatpush1.msra.mxu0 0.0
    %277 = vmatprep.subr.mxu0 0.0
    %278 = vmatpush1.msra.mxu0 0.0
    %279 = vmatprep.subr.mxu0 0.0
    %280 = vmatpush1.msra.mxu0 0.0
    %281 = vmatprep.subr.mxu0 0.0
    %282 = vmatpush1.msra.mxu0 0.0
    %283 = vmatprep.subr.mxu0 0.0
    %284 = vmatpush1.msra.mxu0 0.0
    %285 = vmatprep.mubr.f32.mxu0 0.0
    %286 = vmatmul.mubr.f32.gmra.mrb[0].mxu0 %v219
    %v287 = vpop.f32.mrb[0].mxu0
    %v288 = vadd.f32 %v216, %v287
    %v289 = vpop.f32.mrb[0].mxu0
    %290 = vdwg.mxu0
    %v291 = vmul.f32 %v288, 1.442695
    %v292 = vpow.pop %v291
    %v293 = vmul.f32 %v29, %v292
    %295 = vrot.lane.b32.xlu0 %v293, 120
    %v296 = vpop.permute.xlu0 %295
    %v298 = vadd.f32 %v288, %v296
    %s299 = scalar_lea.vmem %s1, 8
    %v300 = vld [vmem:[%s299] sm:$0xff]
    %s301 = scalar_lea.vmem %s2, 1
    %v302 = vld [vmem:[%s301] sm:$0x1]
    %v304 = vlaneseq
    %v305 = vshrl.u32 %v304, 7
    %v306 = vsub.s32 0, %v305
    %v307 = vrot.slane %v302, %v306
    %v310 = vsel %vm38, %v298, 0
    %312 = vmatprep.subr.mxu0 0.0
    %313 = vmatpush1.msra.mxu0 %v300
    %314 = vmatprep.subr.mxu0 0.0
    %315 = vmatpush1.msra.mxu0 0.0
    %316 = vmatprep.subr.mxu0 0.0
    %317 = vmatpush1.msra.mxu0 0.0
    %318 = vmatprep.subr.mxu0 0.0
    %319 = vmatpush1.msra.mxu0 0.0
    %320 = vmatprep.subr.mxu0 0.0
    %321 = vmatpush1.msra.mxu0 0.0
    %322 = vmatprep.subr.mxu0 0.0
    %323 = vmatpush1.msra.mxu0 0.0
    %324 = vmatprep.subr.mxu0 0.0
    %325 = vmatpush1.msra.mxu0 0.0
    %326 = vmatprep.subr.mxu0 0.0
    %327 = vmatpush1.msra.mxu0 0.0
    %328 = vmatprep.subr.mxu0 0.0
    %329 = vmatpush1.msra.mxu0 0.0
    %330 = vmatprep.subr.mxu0 0.0
    %331 = vmatpush1.msra.mxu0 0.0
    %332 = vmatprep.subr.mxu0 0.0
    %333 = vmatpush1.msra.mxu0 0.0
    %334 = vmatprep.subr.mxu0 0.0
    %335 = vmatpush1.msra.mxu0 0.0
    %336 = vmatprep.subr.mxu0 0.0
    %337 = vmatpush1.msra.mxu0 0.0
    %338 = vmatprep.subr.mxu0 0.0
    %339 = vmatpush1.msra.mxu0 0.0
    %340 = vmatprep.subr.mxu0 0.0
    %341 = vmatpush1.msra.mxu0 0.0
    %342 = vmatprep.subr.mxu0 0.0
    %343 = vmatpush1.msra.mxu0 0.0
    %344 = vmatprep.subr.mxu0 0.0
    %345 = vmatpush1.msra.mxu0 0.0
    %346 = vmatprep.subr.mxu0 0.0
    %347 = vmatpush1.msra.mxu0 0.0
    %348 = vmatprep.subr.mxu0 0.0
    %349 = vmatpush1.msra.mxu0 0.0
    %350 = vmatprep.subr.mxu0 0.0
    %351 = vmatpush1.msra.mxu0 0.0
    %352 = vmatprep.subr.mxu0 0.0
    %353 = vmatpush1.msra.mxu0 0.0
    %354 = vmatprep.subr.mxu0 0.0
    %355 = vmatpush1.msra.mxu0 0.0
    %356 = vmatprep.subr.mxu0 0.0
    %357 = vmatpush1.msra.mxu0 0.0
    %358 = vmatprep.subr.mxu0 0.0
    %359 = vmatpush1.msra.mxu0 0.0
    %360 = vmatprep.subr.mxu0 0.0
    %361 = vmatpush1.msra.mxu0 0.0
    %362 = vmatprep.subr.mxu0 0.0
    %363 = vmatpush1.msra.mxu0 0.0
    %364 = vmatprep.subr.mxu0 0.0
    %365 = vmatpush1.msra.mxu0 0.0
    %366 = vmatprep.subr.mxu0 0.0
    %367 = vmatpush1.msra.mxu0 0.0
    %368 = vmatprep.subr.mxu0 0.0
    %369 = vmatpush1.msra.mxu0 0.0
    %370 = vmatprep.subr.mxu0 0.0
    %371 = vmatpush1.msra.mxu0 0.0
    %372 = vmatprep.subr.mxu0 0.0
    %373 = vmatpush1.msra.mxu0 0.0
    %374 = vmatprep.subr.mxu0 0.0
    %375 = vmatpush1.msra.mxu0 0.0
    %376 = vmatprep.mubr.f32.mxu0 0.0
    %377 = vmatmul.mubr.f32.gmra.mrb[0].mxu0 %v310
    %v378 = vpop.f32.mrb[0].mxu0
    %v379 = vadd.f32 %v307, %v378
    %v380 = vpop.f32.mrb[0].mxu0
    %381 = vdwg.mxu0
    %v382 = vtanh.pop %v379
    %s383 = scalar_lea.vmem %s3, 64
    %v384 = vld [vmem:[%s383] sm:$0xff]
    %v385 = vld [vmem:[%s383 + $0x8] sm:$0xff]
    %v386 = vld [vmem:[%s383 + $0x10] sm:$0xff]
    %v387 = vld [vmem:[%s383 + $0x18] sm:$0xff]
    %v388 = vld [vmem:[%s383 + $0x20] sm:$0xff]
    %v389 = vld [vmem:[%s383 + $0x28] sm:$0xff]
    %v390 = vld [vmem:[%s383 + $0x30] sm:$0xff]
    %v391 = vld [vmem:[%s383 + $0x38] sm:$0xff]
    %s392 = scalar_lea.vmem %s4, 1
    %v393 = vld [vmem:[%s392] sm:$0x1]
    %v395 = vlaneseq
    %v396 = vshrl.u32 %v395, 7
    %v397 = vsub.s32 0, %v396
    %v398 = vrot.slane %v393, %v397
    %v401 = vsel %vm128, %v382, 0
    %403 = vmatprep.subr.mxu0 0.0
    %404 = vmatpush1.msra.mxu0 %v384
    %405 = vmatprep.subr.mxu0 0.0
    %406 = vmatpush1.msra.mxu0 %v385
    %407 = vmatprep.subr.mxu0 0.0
    %408 = vmatpush1.msra.mxu0 %v386
    %409 = vmatprep.subr.mxu0 0.0
    %410 = vmatpush1.msra.mxu0 %v387
    %411 = vmatprep.subr.mxu0 0.0
    %412 = vmatpush1.msra.mxu0 %v388
    %413 = vmatprep.subr.mxu0 0.0
    %414 = vmatpush1.msra.mxu0 %v389
    %415 = vmatprep.subr.mxu0 0.0
    %416 = vmatpush1.msra.mxu0 %v390
    %417 = vmatprep.subr.mxu0 0.0
    %418 = vmatpush1.msra.mxu0 %v391
    %419 = vmatprep.subr.mxu0 0.0
    %420 = vmatpush1.msra.mxu0 0.0
    %421 = vmatprep.subr.mxu0 0.0
    %422 = vmatpush1.msra.mxu0 0.0
    %423 = vmatprep.subr.mxu0 0.0
    %424 = vmatpush1.msra.mxu0 0.0
    %425 = vmatprep.subr.mxu0 0.0
    %426 = vmatpush1.msra.mxu0 0.0
    %427 = vmatprep.subr.mxu0 0.0
    %428 = vmatpush1.msra.mxu0 0.0
    %429 = vmatprep.subr.mxu0 0.0
    %430 = vmatpush1.msra.mxu0 0.0
    %431 = vmatprep.subr.mxu0 0.0
    %432 = vmatpush1.msra.mxu0 0.0
    %433 = vmatprep.subr.mxu0 0.0
    %434 = vmatpush1.msra.mxu0 0.0
    %435 = vmatprep.subr.mxu0 0.0
    %436 = vmatpush1.msra.mxu0 0.0
    %437 = vmatprep.subr.mxu0 0.0
    %438 = vmatpush1.msra.mxu0 0.0
    %439 = vmatprep.subr.mxu0 0.0
    %440 = vmatpush1.msra.mxu0 0.0
    %441 = vmatprep.subr.mxu0 0.0
    %442 = vmatpush1.msra.mxu0 0.0
    %443 = vmatprep.subr.mxu0 0.0
    %444 = vmatpush1.msra.mxu0 0.0
    %445 = vmatprep.subr.mxu0 0.0
    %446 = vmatpush1.msra.mxu0 0.0
    %447 = vmatprep.subr.mxu0 0.0
    %448 = vmatpush1.msra.mxu0 0.0
    %449 = vmatprep.subr.mxu0 0.0
    %450 = vmatpush1.msra.mxu0 0.0
    %451 = vmatprep.subr.mxu0 0.0
    %452 = vmatpush1.msra.mxu0 0.0
    %453 = vmatprep.subr.mxu0 0.0
    %454 = vmatpush1.msra.mxu0 0.0
    %455 = vmatprep.subr.mxu0 0.0
    %456 = vmatpush1.msra.mxu0 0.0
    %457 = vmatprep.subr.mxu0 0.0
    %458 = vmatpush1.msra.mxu0 0.0
    %459 = vmatprep.subr.mxu0 0.0
    %460 = vmatpush1.msra.mxu0 0.0
    %461 = vmatprep.subr.mxu0 0.0
    %462 = vmatpush1.msra.mxu0 0.0
    %463 = vmatprep.subr.mxu0 0.0
    %464 = vmatpush1.msra.mxu0 0.0
    %465 = vmatprep.subr.mxu0 0.0
    %466 = vmatpush1.msra.mxu0 0.0
    %467 = vmatprep.mubr.f32.mxu0 0.0
    %468 = vmatmul.mubr.f32.gmra.mrb[0].mxu0 %v401
    %v469 = vpop.f32.mrb[0].mxu0
    %v470 = vadd.f32 %v398, %v469
    %v471 = vpop.f32.mrb[0].mxu0
    %472 = vdwg.mxu0
    %v473 = vtanh.pop %v470
    %s474 = scalar_lea.vmem %s5, 64
    %v475 = vld [vmem:[%s474] sm:$0xff]
    %v476 = vld [vmem:[%s474 + $0x8] sm:$0xff]
    %v477 = vld [vmem:[%s474 + $0x10] sm:$0xff]
    %v478 = vld [vmem:[%s474 + $0x18] sm:$0xff]
    %v479 = vld [vmem:[%s474 + $0x20] sm:$0xff]
    %v480 = vld [vmem:[%s474 + $0x28] sm:$0xff]
    %v481 = vld [vmem:[%s474 + $0x30] sm:$0xff]
    %v482 = vld [vmem:[%s474 + $0x38] sm:$0xff]
    %s483 = scalar_lea.vmem %s6, 1
    %v484 = vld [vmem:[%s483] sm:$0x1]
    %v486 = vlaneseq
    %v487 = vshrl.u32 %v486, 7
    %v488 = vsub.s32 0, %v487
    %v489 = vrot.slane %v484, %v488
    %v492 = vsel %vm128, %v473, 0
    %494 = vmatprep.subr.mxu0 0.0
    %495 = vmatpush1.msra.mxu0 %v475
    %496 = vmatprep.subr.mxu0 0.0
    %497 = vmatpush1.msra.mxu0 %v476
    %498 = vmatprep.subr.mxu0 0.0
    %499 = vmatpush1.msra.mxu0 %v477
    %500 = vmatprep.subr.mxu0 0.0
    %501 = vmatpush1.msra.mxu0 %v478
    %502 = vmatprep.subr.mxu0 0.0
    %503 = vmatpush1.msra.mxu0 %v479
    %504 = vmatprep.subr.mxu0 0.0
    %505 = vmatpush1.msra.mxu0 %v480
    %506 = vmatprep.subr.mxu0 0.0
    %507 = vmatpush1.msra.mxu0 %v481
    %508 = vmatprep.subr.mxu0 0.0
    %509 = vmatpush1.msra.mxu0 %v482
    %510 = vmatprep.subr.mxu0 0.0
    %511 = vmatpush1.msra.mxu0 0.0
    %512 = vmatprep.subr.mxu0 0.0
    %513 = vmatpush1.msra.mxu0 0.0
    %514 = vmatprep.subr.mxu0 0.0
    %515 = vmatpush1.msra.mxu0 0.0
    %516 = vmatprep.subr.mxu0 0.0
    %517 = vmatpush1.msra.mxu0 0.0
    %518 = vmatprep.subr.mxu0 0.0
    %519 = vmatpush1.msra.mxu0 0.0
    %520 = vmatprep.subr.mxu0 0.0
    %521 = vmatpush1.msra.mxu0 0.0
    %522 = vmatprep.subr.mxu0 0.0
    %523 = vmatpush1.msra.mxu0 0.0
    %524 = vmatprep.subr.mxu0 0.0
    %525 = vmatpush1.msra.mxu0 0.0
    %526 = vmatprep.subr.mxu0 0.0
    %527 = vmatpush1.msra.mxu0 0.0
    %528 = vmatprep.subr.mxu0 0.0
    %529 = vmatpush1.msra.mxu0 0.0
    %530 = vmatprep.subr.mxu0 0.0
    %531 = vmatpush1.msra.mxu0 0.0
    %532 = vmatprep.subr.mxu0 0.0
    %533 = vmatpush1.msra.mxu0 0.0
    %534 = vmatprep.subr.mxu0 0.0
    %535 = vmatpush1.msra.mxu0 0.0
    %536 = vmatprep.subr.mxu0 0.0
    %537 = vmatpush1.msra.mxu0 0.0
    %538 = vmatprep.subr.mxu0 0.0
    %539 = vmatpush1.msra.mxu0 0.0
    %540 = vmatprep.subr.mxu0 0.0
    %541 = vmatpush1.msra.mxu0 0.0
    %542 = vmatprep.subr.mxu0 0.0
    %543 = vmatpush1.msra.mxu0 0.0
    %544 = vmatprep.subr.mxu0 0.0
    %545 = vmatpush1.msra.mxu0 0.0
    %546 = vmatprep.subr.mxu0 0.0
    %547 = vmatpush1.msra.mxu0 0.0
    %548 = vmatprep.subr.mxu0 0.0
    %549 = vmatpush1.msra.mxu0 0.0
    %550 = vmatprep.subr.mxu0 0.0
    %551 = vmatpush1.msra.mxu0 0.0
    %552 = vmatprep.subr.mxu0 0.0
    %553 = vmatpush1.msra.mxu0 0.0
    %554 = vmatprep.subr.mxu0 0.0
    %555 = vmatpush1.msra.mxu0 0.0
    %556 = vmatprep.subr.mxu0 0.0
    %557 = vmatpush1.msra.mxu0 0.0
    %558 = vmatprep.mubr.f32.mxu0 0.0
    %559 = vmatmul.mubr.f32.gmra.mrb[0].mxu0 %v492
    %v560 = vpop.f32.mrb[0].mxu0
    %v561 = vadd.f32 %v489, %v560
    %v562 = vpop.f32.mrb[0].mxu0
    %563 = vdwg.mxu0
    %v564 = vmul.f32 %v561, 1.442695
    %v565 = vpow.pop %v564
    %567 = vrot.lane.b32.xlu0 %v565, 120
    %v568 = vpop.permute.xlu0 %567
    %v570 = vmul.f32 %v29, %v568
    %v571 = vadd.f32 %v561, %v570
    %573 = vrot.lane.b32.xlu0 %v288, 120
    %v574 = vpop.permute.xlu0 %573
    %v576 = vsel %vm38, %v574, 0.0
    %577 = vadd.xlane.f32.xlu0 %v576
    %v578 = vpop.xlane.xlu0 %577
    %v579 = vadd.f32 %v578, 0.0
    %581 = vrot.lane.b32.xlu0 %v561, 120
    %v582 = vpop.permute.xlu0 %581
    %v584 = vsel %vm38, %v582, 0.0
    %585 = vadd.xlane.f32.xlu0 %v584
    %v586 = vpop.xlane.xlu0 %585
    %v587 = vadd.f32 %v579, %v586
    %s588 = scalar_lea.vmem %s1, 16
    %v589 = vld [vmem:[%s588] sm:$0xff]
    %s590 = scalar_lea.vmem %s2, 2
    %v591 = vld [vmem:[%s590] sm:$0x1]
    %v593 = vlaneseq
    %v594 = vshrl.u32 %v593, 7
    %v595 = vsub.s32 0, %v594
    %v596 = vrot.slane %v591, %v595
    %v599 = vsel %vm38, %v571, 0
    %601 = vmatprep.subr.mxu0 0.0
    %602 = vmatpush1.msra.mxu0 %v589
    %603 = vmatprep.subr.mxu0 0.0
    %604 = vmatpush1.msra.mxu0 0.0
    %605 = vmatprep.subr.mxu0 0.0
    %606 = vmatpush1.msra.mxu0 0.0
    %607 = vmatprep.subr.mxu0 0.0
    %608 = vmatpush1.msra.mxu0 0.0
    %609 = vmatprep.subr.mxu0 0.0
    %610 = vmatpush1.msra.mxu0 0.0
    %611 = vmatprep.subr.mxu0 0.0
    %612 = vmatpush1.msra.mxu0 0.0
    %613 = vmatprep.subr.mxu0 0.0
    %614 = vmatpush1.msra.mxu0 0.0
    %615 = vmatprep.subr.mxu0 0.0
    %616 = vmatpush1.msra.mxu0 0.0
    %617 = vmatprep.subr.mxu0 0.0
    %618 = vmatpush1.msra.mxu0 0.0
    %619 = vmatprep.subr.mxu0 0.0
    %620 = vmatpush1.msra.mxu0 0.0
    %621 = vmatprep.subr.mxu0 0.0
    %622 = vmatpush1.msra.mxu0 0.0
    %623 = vmatprep.subr.mxu0 0.0
    %624 = vmatpush1.msra.mxu0 0.0
    %625 = vmatprep.subr.mxu0 0.0
    %626 = vmatpush1.msra.mxu0 0.0
    %627 = vmatprep.subr.mxu0 0.0
    %628 = vmatpush1.msra.mxu0 0.0
    %629 = vmatprep.subr.mxu0 0.0
    %630 = vmatpush1.msra.mxu0 0.0
    %631 = vmatprep.subr.mxu0 0.0
    %632 = vmatpush1.msra.mxu0 0.0
    %633 = vmatprep.subr.mxu0 0.0
    %634 = vmatpush1.msra.mxu0 0.0
    %635 = vmatprep.subr.mxu0 0.0
    %636 = vmatpush1.msra.mxu0 0.0
    %637 = vmatprep.subr.mxu0 0.0
    %638 = vmatpush1.msra.mxu0 0.0
    %639 = vmatprep.subr.mxu0 0.0
    %640 = vmatpush1.msra.mxu0 0.0
    %641 = vmatprep.subr.mxu0 0.0
    %642 = vmatpush1.msra.mxu0 0.0
    %643 = vmatprep.subr.mxu0 0.0
    %644 = vmatpush1.msra.mxu0 0.0
    %645 = vmatprep.subr.mxu0 0.0
    %646 = vmatpush1.msra.mxu0 0.0
    %647 = vmatprep.subr.mxu0 0.0
    %648 = vmatpush1.msra.mxu0 0.0
    %649 = vmatprep.subr.mxu0 0.0
    %650 = vmatpush1.msra.mxu0 0.0
    %651 = vmatprep.subr.mxu0 0.0
    %652 = vmatpush1.msra.mxu0 0.0
    %653 = vmatprep.subr.mxu0 0.0
    %654 = vmatpush1.msra.mxu0 0.0
    %655 = vmatprep.subr.mxu0 0.0
    %656 = vmatpush1.msra.mxu0 0.0
    %657 = vmatprep.subr.mxu0 0.0
    %658 = vmatpush1.msra.mxu0 0.0
    %659 = vmatprep.subr.mxu0 0.0
    %660 = vmatpush1.msra.mxu0 0.0
    %661 = vmatprep.subr.mxu0 0.0
    %662 = vmatpush1.msra.mxu0 0.0
    %663 = vmatprep.subr.mxu0 0.0
    %664 = vmatpush1.msra.mxu0 0.0
    %665 = vmatprep.mubr.f32.mxu0 0.0
    %666 = vmatmul.mubr.f32.gmra.mrb[0].mxu0 %v599
    %v667 = vpop.f32.mrb[0].mxu0
    %v668 = vadd.f32 %v596, %v667
    %v669 = vpop.f32.mrb[0].mxu0
    %670 = vdwg.mxu0
    %v671 = vtanh.pop %v668
    %s672 = scalar_lea.vmem %s3, 128
    %v673 = vld [vmem:[%s672] sm:$0xff]
    %v674 = vld [vmem:[%s672 + $0x8] sm:$0xff]
    %v675 = vld [vmem:[%s672 + $0x10] sm:$0xff]
    %v676 = vld [vmem:[%s672 + $0x18] sm:$0xff]
    %v677 = vld [vmem:[%s672 + $0x20] sm:$0xff]
    %v678 = vld [vmem:[%s672 + $0x28] sm:$0xff]
    %v679 = vld [vmem:[%s672 + $0x30] sm:$0xff]
    %v680 = vld [vmem:[%s672 + $0x38] sm:$0xff]
    %s681 = scalar_lea.vmem %s4, 2
    %v682 = vld [vmem:[%s681] sm:$0x1]
    %v684 = vlaneseq
    %v685 = vshrl.u32 %v684, 7
    %v686 = vsub.s32 0, %v685
    %v687 = vrot.slane %v682, %v686
    %v690 = vsel %vm128, %v671, 0
    %692 = vmatprep.subr.mxu0 0.0
    %693 = vmatpush1.msra.mxu0 %v673
    %694 = vmatprep.subr.mxu0 0.0
    %695 = vmatpush1.msra.mxu0 %v674
    %696 = vmatprep.subr.mxu0 0.0
    %697 = vmatpush1.msra.mxu0 %v675
    %698 = vmatprep.subr.mxu0 0.0
    %699 = vmatpush1.msra.mxu0 %v676
    %700 = vmatprep.subr.mxu0 0.0
    %701 = vmatpush1.msra.mxu0 %v677
    %702 = vmatprep.subr.mxu0 0.0
    %703 = vmatpush1.msra.mxu0 %v678
    %704 = vmatprep.subr.mxu0 0.0
    %705 = vmatpush1.msra.mxu0 %v679
    %706 = vmatprep.subr.mxu0 0.0
    %707 = vmatpush1.msra.mxu0 %v680
    %708 = vmatprep.subr.mxu0 0.0
    %709 = vmatpush1.msra.mxu0 0.0
    %710 = vmatprep.subr.mxu0 0.0
    %711 = vmatpush1.msra.mxu0 0.0
    %712 = vmatprep.subr.mxu0 0.0
    %713 = vmatpush1.msra.mxu0 0.0
    %714 = vmatprep.subr.mxu0 0.0
    %715 = vmatpush1.msra.mxu0 0.0
    %716 = vmatprep.subr.mxu0 0.0
    %717 = vmatpush1.msra.mxu0 0.0
    %718 = vmatprep.subr.mxu0 0.0
    %719 = vmatpush1.msra.mxu0 0.0
    %720 = vmatprep.subr.mxu0 0.0
    %721 = vmatpush1.msra.mxu0 0.0
    %722 = vmatprep.subr.mxu0 0.0
    %723 = vmatpush1.msra.mxu0 0.0
    %724 = vmatprep.subr.mxu0 0.0
    %725 = vmatpush1.msra.mxu0 0.0
    %726 = vmatprep.subr.mxu0 0.0
    %727 = vmatpush1.msra.mxu0 0.0
    %728 = vmatprep.subr.mxu0 0.0
    %729 = vmatpush1.msra.mxu0 0.0
    %730 = vmatprep.subr.mxu0 0.0
    %731 = vmatpush1.msra.mxu0 0.0
    %732 = vmatprep.subr.mxu0 0.0
    %733 = vmatpush1.msra.mxu0 0.0
    %734 = vmatprep.subr.mxu0 0.0
    %735 = vmatpush1.msra.mxu0 0.0
    %736 = vmatprep.subr.mxu0 0.0
    %737 = vmatpush1.msra.mxu0 0.0
    %738 = vmatprep.subr.mxu0 0.0
    %739 = vmatpush1.msra.mxu0 0.0
    %740 = vmatprep.subr.mxu0 0.0
    %741 = vmatpush1.msra.mxu0 0.0
    %742 = vmatprep.subr.mxu0 0.0
    %743 = vmatpush1.msra.mxu0 0.0
    %744 = vmatprep.subr.mxu0 0.0
    %745 = vmatpush1.msra.mxu0 0.0
    %746 = vmatprep.subr.mxu0 0.0
    %747 = vmatpush1.msra.mxu0 0.0
    %748 = vmatprep.subr.mxu0 0.0
    %749 = vmatpush1.msra.mxu0 0.0
    %750 = vmatprep.subr.mxu0 0.0
    %751 = vmatpush1.msra.mxu0 0.0
    %752 = vmatprep.subr.mxu0 0.0
    %753 = vmatpush1.msra.mxu0 0.0
    %754 = vmatprep.subr.mxu0 0.0
    %755 = vmatpush1.msra.mxu0 0.0
    %756 = vmatprep.mubr.f32.mxu0 0.0
    %757 = vmatmul.mubr.f32.gmra.mrb[0].mxu0 %v690
    %v758 = vpop.f32.mrb[0].mxu0
    %v759 = vadd.f32 %v687, %v758
    %v760 = vpop.f32.mrb[0].mxu0
    %761 = vdwg.mxu0
    %v762 = vtanh.pop %v759
    %s763 = scalar_lea.vmem %s5, 128
    %v764 = vld [vmem:[%s763] sm:$0xff]
    %v765 = vld [vmem:[%s763 + $0x8] sm:$0xff]
    %v766 = vld [vmem:[%s763 + $0x10] sm:$0xff]
    %v767 = vld [vmem:[%s763 + $0x18] sm:$0xff]
    %v768 = vld [vmem:[%s763 + $0x20] sm:$0xff]
    %v769 = vld [vmem:[%s763 + $0x28] sm:$0xff]
    %v770 = vld [vmem:[%s763 + $0x30] sm:$0xff]
    %v771 = vld [vmem:[%s763 + $0x38] sm:$0xff]
    %s772 = scalar_lea.vmem %s6, 2
    %v773 = vld [vmem:[%s772] sm:$0x1]
    %v775 = vlaneseq
    %v776 = vshrl.u32 %v775, 7
    %v777 = vsub.s32 0, %v776
    %v778 = vrot.slane %v773, %v777
    %v781 = vsel %vm128, %v762, 0
    %783 = vmatprep.subr.mxu0 0.0
    %784 = vmatpush1.msra.mxu0 %v764
    %785 = vmatprep.subr.mxu0 0.0
    %786 = vmatpush1.msra.mxu0 %v765
    %787 = vmatprep.subr.mxu0 0.0
    %788 = vmatpush1.msra.mxu0 %v766
    %789 = vmatprep.subr.mxu0 0.0
    %790 = vmatpush1.msra.mxu0 %v767
    %791 = vmatprep.subr.mxu0 0.0
    %792 = vmatpush1.msra.mxu0 %v768
    %793 = vmatprep.subr.mxu0 0.0
    %794 = vmatpush1.msra.mxu0 %v769
    %795 = vmatprep.subr.mxu0 0.0
    %796 = vmatpush1.msra.mxu0 %v770
    %797 = vmatprep.subr.mxu0 0.0
    %798 = vmatpush1.msra.mxu0 %v771
    %799 = vmatprep.subr.mxu0 0.0
    %800 = vmatpush1.msra.mxu0 0.0
    %801 = vmatprep.subr.mxu0 0.0
    %802 = vmatpush1.msra.mxu0 0.0
    %803 = vmatprep.subr.mxu0 0.0
    %804 = vmatpush1.msra.mxu0 0.0
    %805 = vmatprep.subr.mxu0 0.0
    %806 = vmatpush1.msra.mxu0 0.0
    %807 = vmatprep.subr.mxu0 0.0
    %808 = vmatpush1.msra.mxu0 0.0
    %809 = vmatprep.subr.mxu0 0.0
    %810 = vmatpush1.msra.mxu0 0.0
    %811 = vmatprep.subr.mxu0 0.0
    %812 = vmatpush1.msra.mxu0 0.0
    %813 = vmatprep.subr.mxu0 0.0
    %814 = vmatpush1.msra.mxu0 0.0
    %815 = vmatprep.subr.mxu0 0.0
    %816 = vmatpush1.msra.mxu0 0.0
    %817 = vmatprep.subr.mxu0 0.0
    %818 = vmatpush1.msra.mxu0 0.0
    %819 = vmatprep.subr.mxu0 0.0
    %820 = vmatpush1.msra.mxu0 0.0
    %821 = vmatprep.subr.mxu0 0.0
    %822 = vmatpush1.msra.mxu0 0.0
    %823 = vmatprep.subr.mxu0 0.0
    %824 = vmatpush1.msra.mxu0 0.0
    %825 = vmatprep.subr.mxu0 0.0
    %826 = vmatpush1.msra.mxu0 0.0
    %827 = vmatprep.subr.mxu0 0.0
    %828 = vmatpush1.msra.mxu0 0.0
    %829 = vmatprep.subr.mxu0 0.0
    %830 = vmatpush1.msra.mxu0 0.0
    %831 = vmatprep.subr.mxu0 0.0
    %832 = vmatpush1.msra.mxu0 0.0
    %833 = vmatprep.subr.mxu0 0.0
    %834 = vmatpush1.msra.mxu0 0.0
    %835 = vmatprep.subr.mxu0 0.0
    %836 = vmatpush1.msra.mxu0 0.0
    %837 = vmatprep.subr.mxu0 0.0
    %838 = vmatpush1.msra.mxu0 0.0
    %839 = vmatprep.subr.mxu0 0.0
    %840 = vmatpush1.msra.mxu0 0.0
    %841 = vmatprep.subr.mxu0 0.0
    %842 = vmatpush1.msra.mxu0 0.0
    %843 = vmatprep.subr.mxu0 0.0
    %844 = vmatpush1.msra.mxu0 0.0
    %845 = vmatprep.subr.mxu0 0.0
    %846 = vmatpush1.msra.mxu0 0.0
    %847 = vmatprep.mubr.f32.mxu0 0.0
    %848 = vmatmul.mubr.f32.gmra.mrb[0].mxu0 %v781
    %v849 = vpop.f32.mrb[0].mxu0
    %v850 = vadd.f32 %v778, %v849
    %v851 = vpop.f32.mrb[0].mxu0
    %852 = vdwg.mxu0
    %v853 = vmul.f32 %v850, 1.442695
    %v854 = vpow.pop %v853
    %856 = vrot.lane.b32.xlu0 %v854, 120
    %v857 = vpop.permute.xlu0 %856
    %v859 = vmul.f32 %v298, %v857
    %v860 = vadd.f32 %v850, %v859
    %s861 = scalar_lea.vmem %s1, 24
    %v862 = vld [vmem:[%s861] sm:$0xff]
    %s863 = scalar_lea.vmem %s2, 3
    %v864 = vld [vmem:[%s863] sm:$0x1]
    %v866 = vlaneseq
    %v867 = vshrl.u32 %v866, 7
    %v868 = vsub.s32 0, %v867
    %v869 = vrot.slane %v864, %v868
    %v872 = vsel %vm38, %v860, 0
    %874 = vmatprep.subr.mxu0 0.0
    %875 = vmatpush1.msra.mxu0 %v862
    %876 = vmatprep.subr.mxu0 0.0
    %877 = vmatpush1.msra.mxu0 0.0
    %878 = vmatprep.subr.mxu0 0.0
    %879 = vmatpush1.msra.mxu0 0.0
    %880 = vmatprep.subr.mxu0 0.0
    %881 = vmatpush1.msra.mxu0 0.0
    %882 = vmatprep.subr.mxu0 0.0
    %883 = vmatpush1.msra.mxu0 0.0
    %884 = vmatprep.subr.mxu0 0.0
    %885 = vmatpush1.msra.mxu0 0.0
    %886 = vmatprep.subr.mxu0 0.0
    %887 = vmatpush1.msra.mxu0 0.0
    %888 = vmatprep.subr.mxu0 0.0
    %889 = vmatpush1.msra.mxu0 0.0
    %890 = vmatprep.subr.mxu0 0.0
    %891 = vmatpush1.msra.mxu0 0.0
    %892 = vmatprep.subr.mxu0 0.0
    %893 = vmatpush1.msra.mxu0 0.0
    %894 = vmatprep.subr.mxu0 0.0
    %895 = vmatpush1.msra.mxu0 0.0
    %896 = vmatprep.subr.mxu0 0.0
    %897 = vmatpush1.msra.mxu0 0.0
    %898 = vmatprep.subr.mxu0 0.0
    %899 = vmatpush1.msra.mxu0 0.0
    %900 = vmatprep.subr.mxu0 0.0
    %901 = vmatpush1.msra.mxu0 0.0
    %902 = vmatprep.subr.mxu0 0.0
    %903 = vmatpush1.msra.mxu0 0.0
    %904 = vmatprep.subr.mxu0 0.0
    %905 = vmatpush1.msra.mxu0 0.0
    %906 = vmatprep.subr.mxu0 0.0
    %907 = vmatpush1.msra.mxu0 0.0
    %908 = vmatprep.subr.mxu0 0.0
    %909 = vmatpush1.msra.mxu0 0.0
    %910 = vmatprep.subr.mxu0 0.0
    %911 = vmatpush1.msra.mxu0 0.0
    %912 = vmatprep.subr.mxu0 0.0
    %913 = vmatpush1.msra.mxu0 0.0
    %914 = vmatprep.subr.mxu0 0.0
    %915 = vmatpush1.msra.mxu0 0.0
    %916 = vmatprep.subr.mxu0 0.0
    %917 = vmatpush1.msra.mxu0 0.0
    %918 = vmatprep.subr.mxu0 0.0
    %919 = vmatpush1.msra.mxu0 0.0
    %920 = vmatprep.subr.mxu0 0.0
    %921 = vmatpush1.msra.mxu0 0.0
    %922 = vmatprep.subr.mxu0 0.0
    %923 = vmatpush1.msra.mxu0 0.0
    %924 = vmatprep.subr.mxu0 0.0
    %925 = vmatpush1.msra.mxu0 0.0
    %926 = vmatprep.subr.mxu0 0.0
    %927 = vmatpush1.msra.mxu0 0.0
    %928 = vmatprep.subr.mxu0 0.0
    %929 = vmatpush1.msra.mxu0 0.0
    %930 = vmatprep.subr.mxu0 0.0
    %931 = vmatpush1.msra.mxu0 0.0
    %932 = vmatprep.subr.mxu0 0.0
    %933 = vmatpush1.msra.mxu0 0.0
    %934 = vmatprep.subr.mxu0 0.0
    %935 = vmatpush1.msra.mxu0 0.0
    %936 = vmatprep.subr.mxu0 0.0
    %937 = vmatpush1.msra.mxu0 0.0
    %938 = vmatprep.mubr.f32.mxu0 0.0
    %939 = vmatmul.mubr.f32.gmra.mrb[0].mxu0 %v872
    %v940 = vpop.f32.mrb[0].mxu0
    %v941 = vadd.f32 %v869, %v940
    %v942 = vpop.f32.mrb[0].mxu0
    %943 = vdwg.mxu0
    %v944 = vtanh.pop %v941
    %s945 = scalar_lea.vmem %s3, 192
    %v946 = vld [vmem:[%s945] sm:$0xff]
    %v947 = vld [vmem:[%s945 + $0x8] sm:$0xff]
    %v948 = vld [vmem:[%s945 + $0x10] sm:$0xff]
    %v949 = vld [vmem:[%s945 + $0x18] sm:$0xff]
    %v950 = vld [vmem:[%s945 + $0x20] sm:$0xff]
    %v951 = vld [vmem:[%s945 + $0x28] sm:$0xff]
    %v952 = vld [vmem:[%s945 + $0x30] sm:$0xff]
    %v953 = vld [vmem:[%s945 + $0x38] sm:$0xff]
    %s954 = scalar_lea.vmem %s4, 3
    %v955 = vld [vmem:[%s954] sm:$0x1]
    %v957 = vlaneseq
    %v958 = vshrl.u32 %v957, 7
    %v959 = vsub.s32 0, %v958
    %v960 = vrot.slane %v955, %v959
    %v963 = vsel %vm128, %v944, 0
    %965 = vmatprep.subr.mxu0 0.0
    %966 = vmatpush1.msra.mxu0 %v946
    %967 = vmatprep.subr.mxu0 0.0
    %968 = vmatpush1.msra.mxu0 %v947
    %969 = vmatprep.subr.mxu0 0.0
    %970 = vmatpush1.msra.mxu0 %v948
    %971 = vmatprep.subr.mxu0 0.0
    %972 = vmatpush1.msra.mxu0 %v949
    %973 = vmatprep.subr.mxu0 0.0
    %974 = vmatpush1.msra.mxu0 %v950
    %975 = vmatprep.subr.mxu0 0.0
    %976 = vmatpush1.msra.mxu0 %v951
    %977 = vmatprep.subr.mxu0 0.0
    %978 = vmatpush1.msra.mxu0 %v952
    %979 = vmatprep.subr.mxu0 0.0
    %980 = vmatpush1.msra.mxu0 %v953
    %981 = vmatprep.subr.mxu0 0.0
    %982 = vmatpush1.msra.mxu0 0.0
    %983 = vmatprep.subr.mxu0 0.0
    %984 = vmatpush1.msra.mxu0 0.0
    %985 = vmatprep.subr.mxu0 0.0
    %986 = vmatpush1.msra.mxu0 0.0
    %987 = vmatprep.subr.mxu0 0.0
    %988 = vmatpush1.msra.mxu0 0.0
    %989 = vmatprep.subr.mxu0 0.0
    %990 = vmatpush1.msra.mxu0 0.0
    %991 = vmatprep.subr.mxu0 0.0
    %992 = vmatpush1.msra.mxu0 0.0
    %993 = vmatprep.subr.mxu0 0.0
    %994 = vmatpush1.msra.mxu0 0.0
    %995 = vmatprep.subr.mxu0 0.0
    %996 = vmatpush1.msra.mxu0 0.0
    %997 = vmatprep.subr.mxu0 0.0
    %998 = vmatpush1.msra.mxu0 0.0
    %999 = vmatprep.subr.mxu0 0.0
    %1000 = vmatpush1.msra.mxu0 0.0
    %1001 = vmatprep.subr.mxu0 0.0
    %1002 = vmatpush1.msra.mxu0 0.0
    %1003 = vmatprep.subr.mxu0 0.0
    %1004 = vmatpush1.msra.mxu0 0.0
    %1005 = vmatprep.subr.mxu0 0.0
    %1006 = vmatpush1.msra.mxu0 0.0
    %1007 = vmatprep.subr.mxu0 0.0
    %1008 = vmatpush1.msra.mxu0 0.0
    %1009 = vmatprep.subr.mxu0 0.0
    %1010 = vmatpush1.msra.mxu0 0.0
    %1011 = vmatprep.subr.mxu0 0.0
    %1012 = vmatpush1.msra.mxu0 0.0
    %1013 = vmatprep.subr.mxu0 0.0
    %1014 = vmatpush1.msra.mxu0 0.0
    %1015 = vmatprep.subr.mxu0 0.0
    %1016 = vmatpush1.msra.mxu0 0.0
    %1017 = vmatprep.subr.mxu0 0.0
    %1018 = vmatpush1.msra.mxu0 0.0
    %1019 = vmatprep.subr.mxu0 0.0
    %1020 = vmatpush1.msra.mxu0 0.0
    %1021 = vmatprep.subr.mxu0 0.0
    %1022 = vmatpush1.msra.mxu0 0.0
    %1023 = vmatprep.subr.mxu0 0.0
    %1024 = vmatpush1.msra.mxu0 0.0
    %1025 = vmatprep.subr.mxu0 0.0
    %1026 = vmatpush1.msra.mxu0 0.0
    %1027 = vmatprep.subr.mxu0 0.0
    %1028 = vmatpush1.msra.mxu0 0.0
    %1029 = vmatprep.mubr.f32.mxu0 0.0
    %1030 = vmatmul.mubr.f32.gmra.mrb[0].mxu0 %v963
    %v1031 = vpop.f32.mrb[0].mxu0
    %v1032 = vadd.f32 %v960, %v1031
    %v1033 = vpop.f32.mrb[0].mxu0
    %1034 = vdwg.mxu0
    %v1035 = vtanh.pop %v1032
    %s1036 = scalar_lea.vmem %s5, 192
    %v1037 = vld [vmem:[%s1036] sm:$0xff]
    %v1038 = vld [vmem:[%s1036 + $0x8] sm:$0xff]
    %v1039 = vld [vmem:[%s1036 + $0x10] sm:$0xff]
    %v1040 = vld [vmem:[%s1036 + $0x18] sm:$0xff]
    %v1041 = vld [vmem:[%s1036 + $0x20] sm:$0xff]
    %v1042 = vld [vmem:[%s1036 + $0x28] sm:$0xff]
    %v1043 = vld [vmem:[%s1036 + $0x30] sm:$0xff]
    %v1044 = vld [vmem:[%s1036 + $0x38] sm:$0xff]
    %s1045 = scalar_lea.vmem %s6, 3
    %v1046 = vld [vmem:[%s1045] sm:$0x1]
    %v1048 = vlaneseq
    %v1049 = vshrl.u32 %v1048, 7
    %v1050 = vsub.s32 0, %v1049
    %v1051 = vrot.slane %v1046, %v1050
    %v1054 = vsel %vm128, %v1035, 0
    %1056 = vmatprep.subr.mxu0 0.0
    %1057 = vmatpush1.msra.mxu0 %v1037
    %1058 = vmatprep.subr.mxu0 0.0
    %1059 = vmatpush1.msra.mxu0 %v1038
    %1060 = vmatprep.subr.mxu0 0.0
    %1061 = vmatpush1.msra.mxu0 %v1039
    %1062 = vmatprep.subr.mxu0 0.0
    %1063 = vmatpush1.msra.mxu0 %v1040
    %1064 = vmatprep.subr.mxu0 0.0
    %1065 = vmatpush1.msra.mxu0 %v1041
    %1066 = vmatprep.subr.mxu0 0.0
    %1067 = vmatpush1.msra.mxu0 %v1042
    %1068 = vmatprep.subr.mxu0 0.0
    %1069 = vmatpush1.msra.mxu0 %v1043
    %1070 = vmatprep.subr.mxu0 0.0
    %1071 = vmatpush1.msra.mxu0 %v1044
    %1072 = vmatprep.subr.mxu0 0.0
    %1073 = vmatpush1.msra.mxu0 0.0
    %1074 = vmatprep.subr.mxu0 0.0
    %1075 = vmatpush1.msra.mxu0 0.0
    %1076 = vmatprep.subr.mxu0 0.0
    %1077 = vmatpush1.msra.mxu0 0.0
    %1078 = vmatprep.subr.mxu0 0.0
    %1079 = vmatpush1.msra.mxu0 0.0
    %1080 = vmatprep.subr.mxu0 0.0
    %1081 = vmatpush1.msra.mxu0 0.0
    %1082 = vmatprep.subr.mxu0 0.0
    %1083 = vmatpush1.msra.mxu0 0.0
    %1084 = vmatprep.subr.mxu0 0.0
    %1085 = vmatpush1.msra.mxu0 0.0
    %1086 = vmatprep.subr.mxu0 0.0
    %1087 = vmatpush1.msra.mxu0 0.0
    %1088 = vmatprep.subr.mxu0 0.0
    %1089 = vmatpush1.msra.mxu0 0.0
    %1090 = vmatprep.subr.mxu0 0.0
    %1091 = vmatpush1.msra.mxu0 0.0
    %1092 = vmatprep.subr.mxu0 0.0
    %1093 = vmatpush1.msra.mxu0 0.0
    %1094 = vmatprep.subr.mxu0 0.0
    %1095 = vmatpush1.msra.mxu0 0.0
    %1096 = vmatprep.subr.mxu0 0.0
    %1097 = vmatpush1.msra.mxu0 0.0
    %1098 = vmatprep.subr.mxu0 0.0
    %1099 = vmatpush1.msra.mxu0 0.0
    %1100 = vmatprep.subr.mxu0 0.0
    %1101 = vmatpush1.msra.mxu0 0.0
    %1102 = vmatprep.subr.mxu0 0.0
    %1103 = vmatpush1.msra.mxu0 0.0
    %1104 = vmatprep.subr.mxu0 0.0
    %1105 = vmatpush1.msra.mxu0 0.0
    %1106 = vmatprep.subr.mxu0 0.0
    %1107 = vmatpush1.msra.mxu0 0.0
    %1108 = vmatprep.subr.mxu0 0.0
    %1109 = vmatpush1.msra.mxu0 0.0
    %1110 = vmatprep.subr.mxu0 0.0
    %1111 = vmatpush1.msra.mxu0 0.0
    %1112 = vmatprep.subr.mxu0 0.0
    %1113 = vmatpush1.msra.mxu0 0.0
    %1114 = vmatprep.subr.mxu0 0.0
    %1115 = vmatpush1.msra.mxu0 0.0
    %1116 = vmatprep.subr.mxu0 0.0
    %1117 = vmatpush1.msra.mxu0 0.0
    %1118 = vmatprep.subr.mxu0 0.0
    %1119 = vmatpush1.msra.mxu0 0.0
    %1120 = vmatprep.mubr.f32.mxu0 0.0
    %1121 = vmatmul.mubr.f32.gmra.mrb[0].mxu0 %v1054
    %v1122 = vpop.f32.mrb[0].mxu0
    %v1123 = vadd.f32 %v1051, %v1122
    %v1124 = vpop.f32.mrb[0].mxu0
    %1125 = vdwg.mxu0
    %v1126 = vmul.f32 %v1123, 1.442695
    %v1127 = vpow.pop %v1126
    %1129 = vrot.lane.b32.xlu0 %v1127, 120
    %v1130 = vpop.permute.xlu0 %1129
    %v1132 = vmul.f32 %v571, %v1130
    %v1133 = vadd.f32 %v1123, %v1132
    %1135 = vrot.lane.b32.xlu0 %v850, 120
    %v1136 = vpop.permute.xlu0 %1135
    %v1138 = vsel %vm38, %v1136, 0.0
    %1139 = vadd.xlane.f32.xlu0 %v1138
    %v1140 = vpop.xlane.xlu0 %1139
    %v1141 = vadd.f32 %v587, %v1140
    %1143 = vrot.lane.b32.xlu0 %v1123, 120
    %v1144 = vpop.permute.xlu0 %1143
    %v1146 = vsel %vm38, %v1144, 0.0
    %1147 = vadd.xlane.f32.xlu0 %v1146
    %v1148 = vpop.xlane.xlu0 %1147
    %v1149 = vadd.f32 %v1141, %v1148
    %1150 = vrot.lane.b32.xlu0 %v860, 8
    %v1151 = vpop.permute.xlu0 %1150
    %v1153 = vsel %vm38, %v1133, %v1151
    %vm1154 = vcmask 130048
    %1155 = vst.msk [vmem:[#allocation2] sm:$0xff] %vm1154, %v1153
    %v1156 = vmul.f32 %v1153, -0.5
    %v1157 = vmul.f32 %v1156, %v1153
    %v1158 = vsub.f32 %v1157, 0.9189385
    %v1159 = vsel %vm1154, %v1158, 0.0
    %1160 = vadd.xlane.f32.xlu0 %v1159
    %v1161 = vpop.xlane.xlu0 %1160
    %vm1162 = vcmask 7168
    %v1163 = vsel %vm1162, %v1161, %v1149
    %vm1164 = vcmask 15360
    %1165 = vst.msk [vmem:[%s8] sm:$0xff] %vm1164, %v1163
    // Predicated region
    $region30: #{tpu_custom_call.1} parent=1 // pred_check
      _
    $region31: #{tpu_custom_call.1} parent=1 // pred_check_branch
      %1167 = sbr.rel (0) target = $region33
    $region32: #{tpu_custom_call.1} parent=1 // pred_region
      %s1169 = ssub.s32 128, 128
      %1170 = vsyncadd [#allocation3], %s1169
      %s1172 = sshll.u32 [#allocation2], 4
      %s1173 = int_to_ptr.vmem [resolvable:$true] %s1172
      %1175 = dma.vmem_to_hbm [thread:$0]  %s1173, 128, %s7, [#allocation3]
    $region33: #{tpu_custom_call.1} parent=1 // pred_fallthru
      _
    // Predicated region
    $region34: #{tpu_custom_call.1} parent=1 // pred_check
      _
    $region35: #{tpu_custom_call.1} parent=1 // pred_check_branch
      %1177 = sbr.rel (0) target = $region37
    $region36: #{tpu_custom_call.1} parent=1 // pred_region
      _
    $region37: #{tpu_custom_call.1} parent=1 // pred_fallthru
      _
    // Predicated region
    $region38: #{tpu_custom_call.1} parent=1 // pred_check
      _
    $region39: #{tpu_custom_call.1} parent=1 // pred_check_branch
      %1179 = sbr.rel (0) target = $region41
    $region40: #{tpu_custom_call.1} parent=1 // pred_region
      %1180 = dma.done [#allocation3], 128
    $region41: #{tpu_custom_call.1} parent=1 // pred_fallthru
      _
    // Predicated region
    $region42: #{tpu_custom_call.1} parent=1 // pred_check
      _
    $region43: #{tpu_custom_call.1} parent=1 // pred_check_branch
      %1182 = sbr.rel (0) target = $region45
    $region44: #{tpu_custom_call.1} parent=1 // pred_region
      _
    $region45: #{tpu_custom_call.1} parent=1 // pred_fallthru
      _
    %1183 = vsyncpa [#allocation3], 1

</llo_original>
